<compile_context>
chip_gen: v5e
topology: v5e:2x2
jax: 0.10.0
libtpu: 0.0.40
codegen_flags: <defaults>
</compile_context>

<pallas_src>
import functools

import numpy as np
import jax
import jax.numpy as jnp
from jax import lax
from jax.experimental import pallas as pl
from jax.experimental.pallas import tpu as pltpu

F32 = jnp.float32
BF16 = jnp.bfloat16
VMEM_LIMIT = 64 * 1024 * 1024


# ---------------------------------------------------------------------------
# helpers
# ---------------------------------------------------------------------------
def _round_up(n, m):
    return ((n + m - 1) // m) * m


def _pad2(x, rows, cols):
    r, c = x.shape
    if r == rows and c == cols:
        return x
    return jnp.pad(x, ((0, rows - r), (0, cols - c)))


# ---------------------------------------------------------------------------
# Pallas kernels
# ---------------------------------------------------------------------------
def _matmul_kernel(x_ref, w_ref, b_ref, o_ref):
    # y = x @ w + b; bf16 MXU inputs, accumulation directly into the revisited
    # f32 output block (no separate acc scratch), bias fused into the last k.
    k = pl.program_id(2)

    @pl.when(k == 0)
    def _():
        o_ref[...] = jnp.zeros_like(o_ref)

    o_ref[...] += jnp.dot(x_ref[...].astype(BF16), w_ref[...],
                          preferred_element_type=F32)

    @pl.when(k == pl.num_programs(2) - 1)
    def _():
        o_ref[...] += b_ref[...]


def _ln_matmul_kernel(x_ref, g_ref, beta_ref, w_ref, b_ref, o_ref, xn_ref,
                      *, eps, transpose_rhs):
    # y = LayerNorm(x) @ w + b. LN (torch semantics: f32, biased var, eps=1e-5)
    # is computed once per row tile (j == 0) into a bf16 VMEM scratch and
    # reused for every N tile.
    @pl.when(pl.program_id(1) == 0)
    def _():
        x = x_ref[...].astype(F32)
        mean = jnp.mean(x, axis=-1, keepdims=True)
        var = jnp.mean(jnp.square(x - mean), axis=-1, keepdims=True)
        xn = (x - mean) * lax.rsqrt(var + eps) * g_ref[...] + beta_ref[...]
        xn_ref[...] = xn.astype(xn_ref.dtype)

    xn = xn_ref[...]
    if transpose_rhs:                       # w block is (tn, K)
        acc = lax.dot_general(xn, w_ref[...], (((1,), (1,)), ((), ())),
                              preferred_element_type=F32)
    else:                                   # w block is (K, tn)
        acc = jnp.dot(xn, w_ref[...], preferred_element_type=F32)
    o_ref[...] = acc + b_ref[...]


def _layernorm_kernel(x_ref, g_ref, b_ref, o_ref, *, eps):
    x = x_ref[...].astype(F32)
    mean = jnp.mean(x, axis=-1, keepdims=True)
    var = jnp.mean(jnp.square(x - mean), axis=-1, keepdims=True)
    o_ref[...] = (x - mean) * lax.rsqrt(var + eps) * g_ref[...] + b_ref[...]


def _attn_kernel(*refs, kv_len, kv_padded, has_mask):
    # softmax(q k^T + mask) v for one q-tile against the full (resident) K/V of
    # one (batch, head).  Scale is pre-folded into the q projection weights.
    if has_mask:
        q_ref, k_ref, v_ref, m_ref, o_ref = refs
    else:
        q_ref, k_ref, v_ref, o_ref = refs

    q = q_ref[0]                                     # (tq, D) bf16
    k = k_ref[0]                                     # (Tk_pad, D) bf16
    s = lax.dot_general(q, k, (((1,), (1,)), ((), ())),
                        preferred_element_type=F32)  # (tq, Tk_pad) f32
    if has_mask:
        s = s + m_ref[...]
    if kv_padded:
        col = lax.broadcasted_iota(jnp.int32, s.shape, 1)
        s = jnp.where(col < kv_len, s, -1e30)

    m = jnp.max(s, axis=-1, keepdims=True)
    p = jnp.exp(s - m)
    l = jnp.sum(p, axis=-1, keepdims=True)
    o = jnp.dot(p.astype(BF16), v_ref[0], preferred_element_type=F32)
    o_ref[0] = (o * pl.reciprocal(l, approx=True)).astype(o_ref.dtype)


# ---------------------------------------------------------------------------
# pallas_call wrappers (pad-to-aligned tiling)
# ---------------------------------------------------------------------------
def matmul(x2d, w, bias=None, tm_cap=256, tn_cap=512, tk_cap=512):
    """x2d (M, K) @ w (K, N) + bias, K-tiled with f32 output accumulation."""
    M, K = x2d.shape
    N = w.shape[1]
    tm = min(tm_cap, _round_up(M, 8))
    tn = min(tn_cap, _round_up(N, 128))
    tk = min(tk_cap, _round_up(K, 128))
    Mp, Np, Kp = _round_up(M, tm), _round_up(N, tn), _round_up(K, tk)

    xp = _pad2(x2d, Mp, Kp)
    wp = _pad2(w.astype(BF16), Kp, Np)
    b = jnp.zeros((N,), F32) if bias is None else bias.astype(F32)
    bp = _pad2(b.reshape(1, N), 1, Np)

    out = pl.pallas_call(
        _matmul_kernel,
        out_shape=jax.ShapeDtypeStruct((Mp, Np), F32),
        grid=(Mp // tm, Np // tn, Kp // tk),
        in_specs=[pl.BlockSpec((tm, tk), lambda i, j, k: (i, k)),
                  pl.BlockSpec((tk, tn), lambda i, j, k: (k, j)),
                  pl.BlockSpec((1, tn), lambda i, j, k: (0, j))],
        out_specs=pl.BlockSpec((tm, tn), lambda i, j, k: (i, j)),
        compiler_params=pltpu.CompilerParams(
            dimension_semantics=("parallel", "parallel", "arbitrary"),
            vmem_limit_bytes=VMEM_LIMIT),
    )(xp, wp, bp)
    return out[:M, :N]


def ln_matmul(x2d, g, beta, w, bias=None, eps=1e-5, transpose_rhs=False,
              tm_cap=256, tn_cap=512):
    """Fused LayerNorm(x2d) @ w + bias.  K (feature axis) stays full/resident;
    w is bf16, shaped (K, N) or (N, K) when transpose_rhs."""
    M, K = x2d.shape
    N = w.shape[0] if transpose_rhs else w.shape[1]
    tm = min(tm_cap, _round_up(M, 8))
    tn = min(tn_cap, _round_up(N, 128))
    Mp, Np = _round_up(M, tm), _round_up(N, tn)

    xp = _pad2(x2d.astype(F32), Mp, K)
    wq = w.astype(BF16)
    wp = _pad2(wq, Np, K) if transpose_rhs else _pad2(wq, K, Np)
    b = jnp.zeros((N,), F32) if bias is None else bias.astype(F32)
    bp = _pad2(b.reshape(1, N), 1, Np)

    w_spec = (pl.BlockSpec((tn, K), lambda i, j: (j, 0)) if transpose_rhs
              else pl.BlockSpec((K, tn), lambda i, j: (0, j)))

    out = pl.pallas_call(
        functools.partial(_ln_matmul_kernel, eps=eps,
                          transpose_rhs=transpose_rhs),
        out_shape=jax.ShapeDtypeStruct((Mp, Np), F32),
        grid=(Mp // tm, Np // tn),
        in_specs=[pl.BlockSpec((tm, K), lambda i, j: (i, 0)),
                  pl.BlockSpec((1, K), lambda i, j: (0, 0)),
                  pl.BlockSpec((1, K), lambda i, j: (0, 0)),
                  w_spec,
                  pl.BlockSpec((1, tn), lambda i, j: (0, j))],
        out_specs=pl.BlockSpec((tm, tn), lambda i, j: (i, j)),
        scratch_shapes=[pltpu.VMEM((tm, K), BF16)],
        compiler_params=pltpu.CompilerParams(
            # j is "arbitrary": the LN scratch is written at j==0 and reused.
            dimension_semantics=("parallel", "arbitrary"),
            vmem_limit_bytes=VMEM_LIMIT),
    )(xp, g.reshape(1, K).astype(F32), beta.reshape(1, K).astype(F32), wp, bp)
    return out[:M, :N]


def layernorm(x, g, b, eps=1e-5):
    shp = x.shape
    x2 = x.reshape(-1, shp[-1]).astype(F32)
    M, K = x2.shape
    tm = min(256, _round_up(M, 8))
    Mp = _round_up(M, tm)
    xp = _pad2(x2, Mp, K)
    y = pl.pallas_call(
        functools.partial(_layernorm_kernel, eps=eps),
        out_shape=jax.ShapeDtypeStruct((Mp, K), F32),
        grid=(Mp // tm,),
        in_specs=[pl.BlockSpec((tm, K), lambda i: (i, 0)),
                  pl.BlockSpec((1, K), lambda i: (0, 0)),
                  pl.BlockSpec((1, K), lambda i: (0, 0))],
        out_specs=pl.BlockSpec((tm, K), lambda i: (i, 0)),
        compiler_params=pltpu.CompilerParams(
            dimension_semantics=("parallel",)),
    )(xp, g.reshape(1, K).astype(F32), b.reshape(1, K).astype(F32))
    return y[:M].reshape(shp)


def attention(q, k, v, n_head, mask=None):
    """Attention with full K/V per (batch, head) resident in VMEM; grid is
    only (B*H, Tq/tq).  q already carries the softmax scale (folded into the
    projection weights)."""
    B, Tq, S = q.shape
    Tk = k.shape[1]
    D = S // n_head

    def split_heads(t, T):
        # TODO(synk): head split/merge are still XLA HBM transposes; a
        # head-indexed BlockSpec on (B,T,H,D) would need a (8,128)-legal
        # second-minor dim, which H-slicing breaks for D=64.
        return (t.reshape(B, T, n_head, D).transpose(0, 2, 1, 3)
                 .reshape(B * n_head, T, D).astype(BF16))

    qh, kh, vh = split_heads(q, Tq), split_heads(k, Tk), split_heads(v, Tk)

    tq = min(256, _round_up(Tq, 8))
    Tq_pad = _round_up(Tq, tq)
    Tk_pad = _round_up(Tk, 128)
    if Tq_pad != Tq:
        qh = jnp.pad(qh, ((0, 0), (0, Tq_pad - Tq), (0, 0)))
    if Tk_pad != Tk:
        kh = jnp.pad(kh, ((0, 0), (0, Tk_pad - Tk), (0, 0)))
        vh = jnp.pad(vh, ((0, 0), (0, Tk_pad - Tk), (0, 0)))

    in_specs = [pl.BlockSpec((1, tq, D), lambda bh, qi: (bh, qi, 0)),
                pl.BlockSpec((1, Tk_pad, D), lambda bh, qi: (bh, 0, 0)),
                pl.BlockSpec((1, Tk_pad, D), lambda bh, qi: (bh, 0, 0))]
    args = [qh, kh, vh]
    if mask is not None:
        mp = jnp.pad(mask.astype(F32), ((0, Tq_pad - Tq), (0, Tk_pad - Tk)))
        in_specs.append(pl.BlockSpec((tq, Tk_pad), lambda bh, qi: (qi, 0)))
        args.append(mp)

    out = pl.pallas_call(
        functools.partial(_attn_kernel, kv_len=Tk, kv_padded=Tk_pad != Tk,
                          has_mask=mask is not None),
        out_shape=jax.ShapeDtypeStruct((B * n_head, Tq_pad, D), F32),
        grid=(B * n_head, Tq_pad // tq),
        in_specs=in_specs,
        out_specs=pl.BlockSpec((1, tq, D), lambda bh, qi: (bh, qi, 0)),
        compiler_params=pltpu.CompilerParams(
            dimension_semantics=("parallel", "parallel"),
            vmem_limit_bytes=VMEM_LIMIT),
    )(*args)
    out = out[:, :Tq, :]
    return (out.reshape(B, n_head, Tq, D).transpose(0, 2, 1, 3)
               .reshape(B, Tq, S))


# ---------------------------------------------------------------------------
# JAX glue (conv taps, GELU, residual structure)
# ---------------------------------------------------------------------------
def gelu(x):
    # Exact erf-GELU to match torch F.gelu / nn.GELU defaults.
    # TODO(synk): erf lowering inside Mosaic is not guaranteed, so GELU stays
    # in JAX glue instead of being fused into the MLP1 kernel store.
    return jax.nn.gelu(x, approximate=False)


def conv1d(x_btc, w, b, stride):
    """PyTorch Conv1d (kernel=3, padding=1) on channels-last input, built from
    3 shifted taps concatenated along features + one tiled Pallas matmul."""
    B, T, Cin = x_btc.shape
    Cout = w.shape[1]
    xp = jnp.pad(x_btc, ((0, 0), (1, 1), (0, 0)))
    T_out = (T + 2 - 3) // stride + 1
    taps = [xp[:, k: k + stride * (T_out - 1) + 1: stride, :] for k in range(3)]
    patches = jnp.concatenate(taps, axis=-1).reshape(B * T_out, 3 * Cin)
    y = matmul(patches, w, b)
    return y.reshape(B, T_out, Cout)


def residual_block(p, x, n_head, xa=None, mask=None):
    B, T, S = x.shape

    # --- self attention: LayerNorm fused into the single fused-QKV matmul ---
    qkv = ln_matmul(x.reshape(-1, S), p['attn_ln_g'], p['attn_ln_b'],
                    p['attn']['qkv_wT'], p['attn']['qkv_b'])        # (B*T, 3S)
    # TODO(synk): q/k/v slices below are XLA copies; a plane/head-indexed
    # BlockSpec over a (B,T,3,H,D) view would remove them.
    q = qkv[:, :S].reshape(B, T, S)
    k = qkv[:, S:2 * S].reshape(B, T, S)
    v = qkv[:, 2 * S:].reshape(B, T, S)
    wv = attention(q, k, v, n_head, mask)
    x = x + matmul(wv.reshape(-1, S), p['attn']['o_wT'],
                   p['attn']['o_b']).reshape(B, T, S)

    # --- cross attention: LN fused into Q; K/V projections fused into one ---
    if 'cross_attn' in p:
        Ta = xa.shape[1]
        cq = ln_matmul(x.reshape(-1, S), p['cross_ln_g'], p['cross_ln_b'],
                       p['cross_attn']['q_wT'], p['cross_attn']['q_b']
                       ).reshape(B, T, S)
        kv = matmul(xa.reshape(-1, S), p['cross_attn']['kv_wT'],
                    p['cross_attn']['kv_b'])                        # (B*Ta, 2S)
        ck = kv[:, :S].reshape(B, Ta, S)
        cv = kv[:, S:].reshape(B, Ta, S)
        cwv = attention(cq, ck, cv, n_head, None)
        x = x + matmul(cwv.reshape(-1, S), p['cross_attn']['o_wT'],
                       p['cross_attn']['o_b']).reshape(B, T, S)

    # --- MLP: LayerNorm fused into MLP1, GELU in glue, tiled MLP2 ---
    h = ln_matmul(x.reshape(-1, S), p['mlp_ln_g'], p['mlp_ln_b'],
                  p['mlp1_wT'], p['mlp1_b'])
    h = gelu(h)
    h = matmul(h, p['mlp2_wT'], p['mlp2_b'])
    return x + h.reshape(B, T, S)


def encoder_forward(p, mel, n_head):
    # mel: (B, n_mels, T) exactly like the PyTorch module; go channels-last once
    x = gelu(conv1d(mel.transpose(0, 2, 1), p['conv1_wT'], p['conv1_b'], 1))
    x = gelu(conv1d(x, p['conv2_wT'], p['conv2_b'], 2))
    T = x.shape[1]
    if T > 1500:                       # matches the PyTorch hard truncation
        x = x[:, :1500, :]
        T = 1500
    x = x + p['pos_emb'][:T]
    for bp in p['blocks']:
        x = residual_block(bp, x, n_head)
    return layernorm(x, p['ln_post_g'], p['ln_post_b'])


def decoder_forward(p, tokens, xa, n_head, n_vocab):
    B, Tt = tokens.shape
    x = jnp.take(p['tok_emb'], tokens, axis=0).astype(F32) + p['pos_emb'][:Tt]
    mask = p['mask'][:Tt, :Tt]
    for bp in p['blocks']:
        x = residual_block(bp, x, n_head, xa=xa, mask=mask)
    S = x.shape[-1]
    # Final LayerNorm fused into the logits projection; the bf16 (vocab, S)
    # embedding is used directly as a transposed RHS (no HBM duplicate), the
    # vocab axis is streamed in 512-wide tiles, and tm = full M means every
    # vocab tile is read from HBM exactly once.
    logits = ln_matmul(x.reshape(-1, S), p['ln_g'], p['ln_b'], p['tok_emb'],
                       None, transpose_rhs=True, tm_cap=4096, tn_cap=512)
    return logits[:, :n_vocab].reshape(B, Tt, n_vocab)


def whisper_forward(params, mel, tokens, n_audio_head, n_text_head, n_vocab):
    # TODO(synk): video / AV-HuBERT branch, kv_cache hooks, gated x-attn and
    # training-time modality dropout are runtime/IO features outside this
    # inference forward path.
    xa = encoder_forward(params['encoder'], mel, n_audio_head)
    return decoder_forward(params['decoder'], tokens, xa, n_text_head, n_vocab)


# ---------------------------------------------------------------------------
# Deterministic parameter initialization (shapes from Whisper.__init__).
# Linear/Conv weights are stored pre-transposed as (K, N) bf16, QKV (resp.
# K/V) projections are pre-concatenated, the softmax scale is folded into the
# q projection, and the token-embedding vocab axis is pre-padded to a tile
# multiple so the logits matmul never re-pads it.
# ---------------------------------------------------------------------------
def sinusoids(length, channels, max_timescale=10000):
    log_timescale_increment = np.log(max_timescale) / (channels // 2 - 1)
    inv_timescales = np.exp(-log_timescale_increment * np.arange(channels // 2))
    scaled_time = np.arange(length)[:, None] * inv_timescales[None, :]
    return jnp.asarray(
        np.concatenate([np.sin(scaled_time), np.cos(scaled_time)], axis=1),
        dtype=F32)


def init_params(key, dims):
    keys = iter(jax.random.split(key, 512))

    def nrm(shape, scale=0.02):
        return scale * jax.random.normal(next(keys), shape, F32)

    def self_attn_params(S, n_head):
        sc = float(S // n_head) ** -0.5        # softmax scale folded into q
        qkv_w = nrm((S, 3 * S)).at[:, :S].multiply(sc)
        qkv_b = jnp.zeros((3 * S,), F32)       # key third structurally no bias
        return dict(qkv_wT=qkv_w.astype(BF16), qkv_b=qkv_b,
                    o_wT=nrm((S, S)).astype(BF16), o_b=jnp.zeros((S,), F32))

    def cross_attn_params(S, n_head):
        sc = float(S // n_head) ** -0.5
        return dict(q_wT=(nrm((S, S)) * sc).astype(BF16),
                    q_b=jnp.zeros((S,), F32),
                    kv_wT=nrm((S, 2 * S)).astype(BF16),
                    kv_b=jnp.zeros((2 * S,), F32),
                    o_wT=nrm((S, S)).astype(BF16), o_b=jnp.zeros((S,), F32))

    def block_params(S, n_head, cross):
        p = dict(attn=self_attn_params(S, n_head),
                 attn_ln_g=jnp.ones((S,), F32), attn_ln_b=jnp.zeros((S,), F32),
                 mlp1_wT=nrm((S, 4 * S)).astype(BF16),
                 mlp1_b=jnp.zeros((4 * S,), F32),
                 mlp2_wT=nrm((4 * S, S)).astype(BF16),
                 mlp2_b=jnp.zeros((S,), F32),
                 mlp_ln_g=jnp.ones((S,), F32), mlp_ln_b=jnp.zeros((S,), F32))
        if cross:
            p['cross_attn'] = cross_attn_params(S, n_head)
            p['cross_ln_g'] = jnp.ones((S,), F32)
            p['cross_ln_b'] = jnp.zeros((S,), F32)
        return p

    Sa, St = dims['n_audio_state'], dims['n_text_state']
    enc = dict(
        conv1_wT=nrm((dims['n_mels'] * 3, Sa)).astype(BF16),
        conv1_b=jnp.zeros((Sa,), F32),
        conv2_wT=nrm((Sa * 3, Sa)).astype(BF16),
        conv2_b=jnp.zeros((Sa,), F32),
        pos_emb=sinusoids(dims['n_audio_ctx'], Sa),
        blocks=[block_params(Sa, dims['n_audio_head'], cross=False)
                for _ in range(dims['n_audio_layer'])],
        ln_post_g=jnp.ones((Sa,), F32), ln_post_b=jnp.zeros((Sa,), F32),
    )
    n_ctx, n_vocab = dims['n_text_ctx'], dims['n_vocab']
    causal = jnp.where(jnp.arange(n_ctx)[:, None] >= jnp.arange(n_ctx)[None, :],
                       0.0, -jnp.inf).astype(F32)
    vocab_pad = _round_up(n_vocab, 512)
    tok_emb = jnp.zeros((vocab_pad, St), BF16).at[:n_vocab].set(
        nrm((n_vocab, St)).astype(BF16))
    dec = dict(
        tok_emb=tok_emb,
        pos_emb=nrm((n_ctx, St), scale=0.01),
        blocks=[block_params(St, dims['n_text_head'], cross=True)
                for _ in range(dims['n_text_layer'])],
        ln_g=jnp.ones((St,), F32), ln_b=jnp.zeros((St,), F32),
        mask=causal,
    )
    return dict(encoder=enc, decoder=dec)


# ---------------------------------------------------------------------------
if __name__ == "__main__":
    dims = dict(n_mels=8, n_audio_ctx=8, n_audio_state=32, n_audio_head=4,
                n_audio_layer=2, n_vocab=64, n_text_ctx=8, n_text_state=32,
                n_text_head=4, n_text_layer=2)

    key = jax.random.PRNGKey(0)
    k_mel, k_tok, k_param = jax.random.split(key, 3)

    # mel: (batch, n_mels, T) with T=16 -> conv2 (stride 2) gives n_audio_ctx=8
    mel = jax.random.normal(k_mel, (2, dims['n_mels'], 16), F32)
    tokens = jax.random.randint(k_tok, (2, dims['n_text_ctx']), 0, dims['n_vocab'])

    params = init_params(k_param, dims)

    fwd = jax.jit(whisper_forward,
                  static_argnames=('n_audio_head', 'n_text_head', 'n_vocab'))
    logits = fwd(params, mel, tokens,
                 n_audio_head=dims['n_audio_head'],
                 n_text_head=dims['n_text_head'],
                 n_vocab=dims['n_vocab'])
    jax.block_until_ready(logits)
    assert logits.shape == (2, dims['n_text_ctx'], dims['n_vocab'])
    assert logits.dtype == jnp.float32
    print("KERNEL_OK")
</pallas_src>

<mosaic_0001>
module attributes {stable_mosaic.version = 11 : i64} {
  func.func @_ln_matmul_kernel(%arg0: i32, %arg1: i32, %arg2: memref<16x32xf32, #tpu.memory_space<vmem>>, %arg3: memref<1x32xf32, #tpu.memory_space<vmem>>, %arg4: memref<1x32xf32, #tpu.memory_space<vmem>>, %arg5: memref<32x128xbf16, #tpu.memory_space<vmem>>, %arg6: memref<1x128xf32, #tpu.memory_space<vmem>>, %arg7: memref<16x128xf32, #tpu.memory_space<vmem>>, %arg8: memref<16x32xbf16, #tpu.memory_space<vmem>>) attributes {dimension_semantics = [#tpu.dimension_semantics<parallel>, #tpu.dimension_semantics<arbitrary>], iteration_bounds = array<i64: 1, 1>, scalar_prefetch = 0 : i64, scratch_operands = 1 : i64, tpu.core_type = #tpu.core_type<tc>, window_params = [{transform_indices = @transform_0, window_bounds = array<i64: 16, 32>}, {pipeline_mode = #tpu.pipeline_mode<synchronous>, transform_indices = @transform_1, window_bounds = array<i64: 1, 32>}, {pipeline_mode = #tpu.pipeline_mode<synchronous>, transform_indices = @transform_2, window_bounds = array<i64: 1, 32>}, {transform_indices = @transform_3, window_bounds = array<i64: 32, 128>}, {transform_indices = @transform_4, window_bounds = array<i64: 1, 128>}, {transform_indices = @transform_5, window_bounds = array<i64: 16, 128>}]} {
    %c0_i32 = arith.constant 0 : i32
    %0 = arith.cmpi eq, %arg1, %c0_i32 : i32
    %1 = arith.extui %0 : i1 to i32
    %c0_i32_0 = arith.constant 0 : i32
    %2 = arith.cmpi ne, %1, %c0_i32_0 : i32
    scf.if %2 {
      %c0_8 = arith.constant 0 : index
      %c0_9 = arith.constant 0 : index
      %10 = vector.load %arg2[%c0_8, %c0_9] : memref<16x32xf32, #tpu.memory_space<vmem>>, vector<16x32xf32>
      %cst_10 = arith.constant dense<0.000000e+00> : vector<16xf32>
      %11 = vector.multi_reduction <add>, %10, %cst_10 [1] : vector<16x32xf32> to vector<16xf32>
      %12 = vector.shape_cast %11 : vector<16xf32> to vector<16x1xf32>
      %cst_11 = arith.constant 3.200000e+01 : f32
      %13 = vector.broadcast %cst_11 : f32 to vector<16x1xf32>
      %14 = arith.divf %12, %13 : vector<16x1xf32>
      %15 = vector.broadcast %14 : vector<16x1xf32> to vector<16x32xf32>
      %16 = arith.subf %10, %15 : vector<16x32xf32>
      %17 = arith.mulf %16, %16 : vector<16x32xf32>
      %cst_12 = arith.constant dense<0.000000e+00> : vector<16xf32>
      %18 = vector.multi_reduction <add>, %17, %cst_12 [1] : vector<16x32xf32> to vector<16xf32>
      %19 = vector.shape_cast %18 : vector<16xf32> to vector<16x1xf32>
      %cst_13 = arith.constant 3.200000e+01 : f32
      %20 = vector.broadcast %cst_13 : f32 to vector<16x1xf32>
      %21 = arith.divf %19, %20 : vector<16x1xf32>
      %22 = vector.broadcast %14 : vector<16x1xf32> to vector<16x32xf32>
      %23 = arith.subf %10, %22 : vector<16x32xf32>
      %cst_14 = arith.constant 9.99999974E-6 : f32
      %24 = vector.broadcast %cst_14 : f32 to vector<16x1xf32>
      %25 = arith.addf %21, %24 : vector<16x1xf32>
      %26 = math.rsqrt %25 : vector<16x1xf32>
      %27 = vector.broadcast %26 : vector<16x1xf32> to vector<16x32xf32>
      %28 = arith.mulf %23, %27 : vector<16x32xf32>
      %c0_15 = arith.constant 0 : index
      %c0_16 = arith.constant 0 : index
      %29 = vector.load %arg3[%c0_15, %c0_16] : memref<1x32xf32, #tpu.memory_space<vmem>>, vector<1x32xf32>
      %30 = vector.broadcast %29 : vector<1x32xf32> to vector<16x32xf32>
      %31 = arith.mulf %28, %30 : vector<16x32xf32>
      %c0_17 = arith.constant 0 : index
      %c0_18 = arith.constant 0 : index
      %32 = vector.load %arg4[%c0_17, %c0_18] : memref<1x32xf32, #tpu.memory_space<vmem>>, vector<1x32xf32>
      %33 = vector.broadcast %32 : vector<1x32xf32> to vector<16x32xf32>
      %34 = arith.addf %31, %33 : vector<16x32xf32>
      %35 = arith.truncf %34 : vector<16x32xf32> to vector<16x32xbf16>
      %c0_19 = arith.constant 0 : index
      %c0_20 = arith.constant 0 : index
      %36 = vector.load %arg8[%c0_19, %c0_20] : memref<16x32xbf16, #tpu.memory_space<vmem>>, vector<16x32xbf16>
      tpu.vector_store %arg8[%c0_19, %c0_20], %35 {strides = array<i32>} : memref<16x32xbf16, #tpu.memory_space<vmem>>, vector<16x32xbf16>,
    } else {
    }
    %c0 = arith.constant 0 : index
    %c0_1 = arith.constant 0 : index
    %3 = vector.load %arg8[%c0, %c0_1] : memref<16x32xbf16, #tpu.memory_space<vmem>>, vector<16x32xbf16>
    %c0_2 = arith.constant 0 : index
    %c0_3 = arith.constant 0 : index
    %4 = vector.load %arg5[%c0_2, %c0_3] : memref<32x128xbf16, #tpu.memory_space<vmem>>, vector<32x128xbf16>
    %cst = arith.constant dense<0.000000e+00> : vector<16x128xf32>
    %5 = tpu.matmul %3, %4, %cst {dimension_numbers = #tpu.dot_dimension_numbers<[1], [0], [0], [1], [0, 0, 1, 1], [], []>} : vector<16x32xbf16>, vector<32x128xbf16>, vector<16x128xf32> -> vector<16x128xf32>
    %c0_4 = arith.constant 0 : index
    %c0_5 = arith.constant 0 : index
    %6 = vector.load %arg6[%c0_4, %c0_5] : memref<1x128xf32, #tpu.memory_space<vmem>>, vector<1x128xf32>
    %7 = vector.broadcast %6 : vector<1x128xf32> to vector<16x128xf32>
    %8 = arith.addf %5, %7 : vector<16x128xf32>
    %c0_6 = arith.constant 0 : index
    %c0_7 = arith.constant 0 : index
    %9 = vector.load %arg7[%c0_6, %c0_7] : memref<16x128xf32, #tpu.memory_space<vmem>>, vector<16x128xf32>
    tpu.vector_store %arg7[%c0_6, %c0_7], %8 {strides = array<i32>} : memref<16x128xf32, #tpu.memory_space<vmem>>, vector<16x128xf32>,
    return
  }
  func.func @transform_0(%arg0: i32, %arg1: i32) -> (i32, i32) {
    %c0_i32 = arith.constant 0 : i32
    %c0_i32_0 = arith.constant 0 : i32
    return %arg0, %c0_i32 : i32, i32
  }
  func.func @transform_1(%arg0: i32, %arg1: i32) -> (i32, i32) {
    %c0_i32 = arith.constant 0 : i32
    %c0_i32_0 = arith.constant 0 : i32
    %c0_i32_1 = arith.constant 0 : i32
    return %c0_i32, %c0_i32_0 : i32, i32
  }
  func.func @transform_2(%arg0: i32, %arg1: i32) -> (i32, i32) {
    %c0_i32 = arith.constant 0 : i32
    %c0_i32_0 = arith.constant 0 : i32
    %c0_i32_1 = arith.constant 0 : i32
    return %c0_i32, %c0_i32_0 : i32, i32
  }
  func.func @transform_3(%arg0: i32, %arg1: i32) -> (i32, i32) {
    %c0_i32 = arith.constant 0 : i32
    %c0_i32_0 = arith.constant 0 : i32
    return %c0_i32, %arg1 : i32, i32
  }
  func.func @transform_4(%arg0: i32, %arg1: i32) -> (i32, i32) {
    %c0_i32 = arith.constant 0 : i32
    %c0_i32_0 = arith.constant 0 : i32
    return %c0_i32, %arg1 : i32, i32
  }
  func.func @transform_5(%arg0: i32, %arg1: i32) -> (i32, i32) {
    %c0_i32 = arith.constant 0 : i32
    return %arg0, %arg1 : i32, i32
  }
}

module attributes {stable_mosaic.version = 11 : i64} {
  func.func @_attn_kernel(%arg0: i32, %arg1: i32, %arg2: memref<1x8x8xbf16, #tpu.memory_space<vmem>>, %arg3: memref<1x128x8xbf16, #tpu.memory_space<vmem>>, %arg4: memref<1x128x8xbf16, #tpu.memory_space<vmem>>, %arg5: memref<8x128xf32, #tpu.memory_space<vmem>>, %arg6: memref<1x8x8xf32, #tpu.memory_space<vmem>>) attributes {dimension_semantics = [#tpu.dimension_semantics<parallel>, #tpu.dimension_semantics<parallel>], iteration_bounds = array<i64: 8, 1>, scalar_prefetch = 0 : i64, scratch_operands = 0 : i64, tpu.core_type = #tpu.core_type<tc>, window_params = [{transform_indices = @transform_0, window_bounds = array<i64: 1, 8, 8>}, {transform_indices = @transform_1, window_bounds = array<i64: 1, 128, 8>}, {transform_indices = @transform_2, window_bounds = array<i64: 1, 128, 8>}, {transform_indices = @transform_3, window_bounds = array<i64: 8, 128>}, {transform_indices = @transform_4, window_bounds = array<i64: 1, 8, 8>}]} {
    %c0 = arith.constant 0 : index
    %c0_0 = arith.constant 0 : index
    %c0_1 = arith.constant 0 : index
    %0 = vector.load %arg2[%c0, %c0_0, %c0_1] : memref<1x8x8xbf16, #tpu.memory_space<vmem>>, vector<1x8x8xbf16>
    %1 = vector.shape_cast %0 : vector<1x8x8xbf16> to vector<8x8xbf16>
    %c0_2 = arith.constant 0 : index
    %c0_3 = arith.constant 0 : index
    %c0_4 = arith.constant 0 : index
    %2 = vector.load %arg3[%c0_2, %c0_3, %c0_4] : memref<1x128x8xbf16, #tpu.memory_space<vmem>>, vector<1x128x8xbf16>
    %3 = vector.shape_cast %2 : vector<1x128x8xbf16> to vector<128x8xbf16>
    %cst = arith.constant dense<0.000000e+00> : vector<8x128xf32>
    %4 = tpu.matmul %1, %3, %cst {dimension_numbers = #tpu.dot_dimension_numbers<[1], [1], [0], [0], [0, 0, 1, 0], [], []>} : vector<8x8xbf16>, vector<128x8xbf16>, vector<8x128xf32> -> vector<8x128xf32>
    %c0_5 = arith.constant 0 : index
    %c0_6 = arith.constant 0 : index
    %5 = vector.load %arg5[%c0_5, %c0_6] : memref<8x128xf32, #tpu.memory_space<vmem>>, vector<8x128xf32>
    %6 = arith.addf %4, %5 : vector<8x128xf32>
    %7 = tpu.iota {dimensions = array<i32: 1>} : vector<8x128xi32>
    %c8_i32 = arith.constant 8 : i32
    %8 = vector.broadcast %c8_i32 : i32 to vector<8x128xi32>
    %9 = arith.cmpi slt, %7, %8 : vector<8x128xi32>
    %cst_7 = arith.constant -1.000000e+30 : f32
    %10 = vector.broadcast %cst_7 : f32 to vector<8x128xf32>
    %11 = arith.select %9, %6, %10 : vector<8x128xi1>, vector<8x128xf32>
    %cst_8 = arith.constant dense<0xFF800000> : vector<8xf32>
    %12 = vector.multi_reduction <maximumf>, %11, %cst_8 [1] : vector<8x128xf32> to vector<8xf32>
    %13 = vector.shape_cast %12 : vector<8xf32> to vector<8x1xf32>
    %14 = vector.broadcast %13 : vector<8x1xf32> to vector<8x128xf32>
    %15 = arith.subf %11, %14 : vector<8x128xf32>
    %16 = math.exp %15 : vector<8x128xf32>
    %cst_9 = arith.constant dense<0.000000e+00> : vector<8xf32>
    %17 = vector.multi_reduction <add>, %16, %cst_9 [1] : vector<8x128xf32> to vector<8xf32>
    %18 = vector.shape_cast %17 : vector<8xf32> to vector<8x1xf32>
    %19 = arith.truncf %16 : vector<8x128xf32> to vector<8x128xbf16>
    %c0_10 = arith.constant 0 : index
    %c0_11 = arith.constant 0 : index
    %c0_12 = arith.constant 0 : index
    %20 = vector.load %arg4[%c0_10, %c0_11, %c0_12] : memref<1x128x8xbf16, #tpu.memory_space<vmem>>, vector<1x128x8xbf16>
    %21 = vector.shape_cast %20 : vector<1x128x8xbf16> to vector<128x8xbf16>
    %cst_13 = arith.constant dense<0.000000e+00> : vector<8x8xf32>
    %22 = tpu.matmul %19, %21, %cst_13 {dimension_numbers = #tpu.dot_dimension_numbers<[1], [0], [0], [1], [0, 0, 1, 1], [], []>} : vector<8x128xbf16>, vector<128x8xbf16>, vector<8x8xf32> -> vector<8x8xf32>
    %23 = tpu.reciprocal %18 {approx = true} : vector<8x1xf32> -> vector<8x1xf32>
    %24 = vector.broadcast %23 : vector<8x1xf32> to vector<8x8xf32>
    %25 = arith.mulf %22, %24 : vector<8x8xf32>
    %c0_14 = arith.constant 0 : index
    %c0_15 = arith.constant 0 : index
    %c0_16 = arith.constant 0 : index
    %26 = vector.load %arg6[%c0_14, %c0_15, %c0_16] : memref<1x8x8xf32, #tpu.memory_space<vmem>>, vector<1x8x8xf32>
    %27 = vector.shape_cast %26 : vector<1x8x8xf32> to vector<8x8xf32>
    %28 = vector.shape_cast %25 : vector<8x8xf32> to vector<1x8x8xf32>
    tpu.vector_store %arg6[%c0_14, %c0_15, %c0_16], %28 {strides = array<i32>} : memref<1x8x8xf32, #tpu.memory_space<vmem>>, vector<1x8x8xf32>,
    return
  }
  func.func @transform_0(%arg0: i32, %arg1: i32) -> (i32, i32, i32) {
    %c0_i32 = arith.constant 0 : i32
    %c0_i32_0 = arith.constant 0 : i32
    return %arg0, %arg1, %c0_i32 : i32, i32, i32
  }
  func.func @transform_1(%arg0: i32, %arg1: i32) -> (i32, i32, i32) {
    %c0_i32 = arith.constant 0 : i32
    %c0_i32_0 = arith.constant 0 : i32
    %c0_i32_1 = arith.constant 0 : i32
    return %arg0, %c0_i32, %c0_i32_0 : i32, i32, i32
  }
  func.func @transform_2(%arg0: i32, %arg1: i32) -> (i32, i32, i32) {
    %c0_i32 = arith.constant 0 : i32
    %c0_i32_0 = arith.constant 0 : i32
    %c0_i32_1 = arith.constant 0 : i32
    return %arg0, %c0_i32, %c0_i32_0 : i32, i32, i32
  }
  func.func @transform_3(%arg0: i32, %arg1: i32) -> (i32, i32) {
    %c0_i32 = arith.constant 0 : i32
    %c0_i32_0 = arith.constant 0 : i32
    return %arg1, %c0_i32 : i32, i32
  }
  func.func @transform_4(%arg0: i32, %arg1: i32) -> (i32, i32, i32) {
    %c0_i32 = arith.constant 0 : i32
    %c0_i32_0 = arith.constant 0 : i32
    return %arg0, %arg1, %c0_i32 : i32, i32, i32
  }
}

module attributes {stable_mosaic.version = 11 : i64} {
  func.func @_matmul_kernel(%arg0: i32, %arg1: i32, %arg2: i32, %arg3: memref<16x128xf32, #tpu.memory_space<vmem>>, %arg4: memref<128x128xbf16, #tpu.memory_space<vmem>>, %arg5: memref<1x128xf32, #tpu.memory_space<vmem>>, %arg6: memref<16x128xf32, #tpu.memory_space<vmem>>) attributes {dimension_semantics = [#tpu.dimension_semantics<parallel>, #tpu.dimension_semantics<parallel>, #tpu.dimension_semantics<arbitrary>], iteration_bounds = array<i64: 1, 1, 1>, scalar_prefetch = 0 : i64, scratch_operands = 0 : i64, tpu.core_type = #tpu.core_type<tc>, window_params = [{transform_indices = @transform_0, window_bounds = array<i64: 16, 128>}, {transform_indices = @transform_1, window_bounds = array<i64: 128, 128>}, {transform_indices = @transform_2, window_bounds = array<i64: 1, 128>}, {transform_indices = @transform_3, window_bounds = array<i64: 16, 128>}]} {
    %c0_i32 = arith.constant 0 : i32
    %0 = arith.cmpi eq, %arg2, %c0_i32 : i32
    %1 = arith.extui %0 : i1 to i32
    %c0_i32_0 = arith.constant 0 : i32
    %2 = arith.cmpi ne, %1, %c0_i32_0 : i32
    scf.if %2 {
      %cst_10 = arith.constant 0.000000e+00 : f32
      %13 = vector.broadcast %cst_10 : f32 to vector<16x128xf32>
      %c0_11 = arith.constant 0 : index
      %c0_12 = arith.constant 0 : index
      %14 = vector.load %arg6[%c0_11, %c0_12] : memref<16x128xf32, #tpu.memory_space<vmem>>, vector<16x128xf32>
      tpu.vector_store %arg6[%c0_11, %c0_12], %13 {strides = array<i32>} : memref<16x128xf32, #tpu.memory_space<vmem>>, vector<16x128xf32>,
    } else {
    }
    %c0 = arith.constant 0 : index
    %c0_1 = arith.constant 0 : index
    %3 = vector.load %arg6[%c0, %c0_1] : memref<16x128xf32, #tpu.memory_space<vmem>>, vector<16x128xf32>
    %c0_2 = arith.constant 0 : index
    %c0_3 = arith.constant 0 : index
    %4 = vector.load %arg3[%c0_2, %c0_3] : memref<16x128xf32, #tpu.memory_space<vmem>>, vector<16x128xf32>
    %5 = arith.truncf %4 : vector<16x128xf32> to vector<16x128xbf16>
    %c0_4 = arith.constant 0 : index
    %c0_5 = arith.constant 0 : index
    %6 = vector.load %arg4[%c0_4, %c0_5] : memref<128x128xbf16, #tpu.memory_space<vmem>>, vector<128x128xbf16>
    %cst = arith.constant dense<0.000000e+00> : vector<16x128xf32>
    %7 = tpu.matmul %5, %6, %cst {dimension_numbers = #tpu.dot_dimension_numbers<[1], [0], [0], [1], [0, 0, 1, 1], [], []>} : vector<16x128xbf16>, vector<128x128xbf16>, vector<16x128xf32> -> vector<16x128xf32>
    %8 = arith.addf %3, %7 : vector<16x128xf32>
    %c0_6 = arith.constant 0 : index
    %c0_7 = arith.constant 0 : index
    %9 = vector.load %arg6[%c0_6, %c0_7] : memref<16x128xf32, #tpu.memory_space<vmem>>, vector<16x128xf32>
    tpu.vector_store %arg6[%c0_6, %c0_7], %8 {strides = array<i32>} : memref<16x128xf32, #tpu.memory_space<vmem>>, vector<16x128xf32>,
    %c0_i32_8 = arith.constant 0 : i32
    %10 = arith.cmpi eq, %arg2, %c0_i32_8 : i32
    %11 = arith.extui %10 : i1 to i32
    %c0_i32_9 = arith.constant 0 : i32
    %12 = arith.cmpi ne, %11, %c0_i32_9 : i32
    scf.if %12 {
      %c0_10 = arith.constant 0 : index
      %c0_11 = arith.constant 0 : index
      %13 = vector.load %arg6[%c0_10, %c0_11] : memref<16x128xf32, #tpu.memory_space<vmem>>, vector<16x128xf32>
      %c0_12 = arith.constant 0 : index
      %c0_13 = arith.constant 0 : index
      %14 = vector.load %arg5[%c0_12, %c0_13] : memref<1x128xf32, #tpu.memory_space<vmem>>, vector<1x128xf32>
      %15 = vector.broadcast %14 : vector<1x128xf32> to vector<16x128xf32>
      %16 = arith.addf %13, %15 : vector<16x128xf32>
      %c0_14 = arith.constant 0 : index
      %c0_15 = arith.constant 0 : index
      %17 = vector.load %arg6[%c0_14, %c0_15] : memref<16x128xf32, #tpu.memory_space<vmem>>, vector<16x128xf32>
      tpu.vector_store %arg6[%c0_14, %c0_15], %16 {strides = array<i32>} : memref<16x128xf32, #tpu.memory_space<vmem>>, vector<16x128xf32>,
    } else {
    }
    return
  }
  func.func @transform_0(%arg0: i32, %arg1: i32, %arg2: i32) -> (i32, i32) {
    %c0_i32 = arith.constant 0 : i32
    return %arg0, %arg2 : i32, i32
  }
  func.func @transform_1(%arg0: i32, %arg1: i32, %arg2: i32) -> (i32, i32) {
    %c0_i32 = arith.constant 0 : i32
    return %arg2, %arg1 : i32, i32
  }
  func.func @transform_2(%arg0: i32, %arg1: i32, %arg2: i32) -> (i32, i32) {
    %c0_i32 = arith.constant 0 : i32
    %c0_i32_0 = arith.constant 0 : i32
    return %c0_i32, %arg1 : i32, i32
  }
  func.func @transform_3(%arg0: i32, %arg1: i32, %arg2: i32) -> (i32, i32) {
    %c0_i32 = arith.constant 0 : i32
    return %arg0, %arg1 : i32, i32
  }
}

module attributes {stable_mosaic.version = 11 : i64} {
  func.func @_matmul_kernel(%arg0: i32, %arg1: i32, %arg2: i32, %arg3: memref<32x128xf32, #tpu.memory_space<vmem>>, %arg4: memref<128x128xbf16, #tpu.memory_space<vmem>>, %arg5: memref<1x128xf32, #tpu.memory_space<vmem>>, %arg6: memref<32x128xf32, #tpu.memory_space<vmem>>) attributes {dimension_semantics = [#tpu.dimension_semantics<parallel>, #tpu.dimension_semantics<parallel>, #tpu.dimension_semantics<arbitrary>], iteration_bounds = array<i64: 1, 1, 1>, scalar_prefetch = 0 : i64, scratch_operands = 0 : i64, tpu.core_type = #tpu.core_type<tc>, window_params = [{transform_indices = @transform_0, window_bounds = array<i64: 32, 128>}, {transform_indices = @transform_1, window_bounds = array<i64: 128, 128>}, {transform_indices = @transform_2, window_bounds = array<i64: 1, 128>}, {transform_indices = @transform_3, window_bounds = array<i64: 32, 128>}]} {
    %c0_i32 = arith.constant 0 : i32
    %0 = arith.cmpi eq, %arg2, %c0_i32 : i32
    %1 = arith.extui %0 : i1 to i32
    %c0_i32_0 = arith.constant 0 : i32
    %2 = arith.cmpi ne, %1, %c0_i32_0 : i32
    scf.if %2 {
      %cst_10 = arith.constant 0.000000e+00 : f32
      %13 = vector.broadcast %cst_10 : f32 to vector<32x128xf32>
      %c0_11 = arith.constant 0 : index
      %c0_12 = arith.constant 0 : index
      %14 = vector.load %arg6[%c0_11, %c0_12] : memref<32x128xf32, #tpu.memory_space<vmem>>, vector<32x128xf32>
      tpu.vector_store %arg6[%c0_11, %c0_12], %13 {strides = array<i32>} : memref<32x128xf32, #tpu.memory_space<vmem>>, vector<32x128xf32>,
    } else {
    }
    %c0 = arith.constant 0 : index
    %c0_1 = arith.constant 0 : index
    %3 = vector.load %arg6[%c0, %c0_1] : memref<32x128xf32, #tpu.memory_space<vmem>>, vector<32x128xf32>
    %c0_2 = arith.constant 0 : index
    %c0_3 = arith.constant 0 : index
    %4 = vector.load %arg3[%c0_2, %c0_3] : memref<32x128xf32, #tpu.memory_space<vmem>>, vector<32x128xf32>
    %5 = arith.truncf %4 : vector<32x128xf32> to vector<32x128xbf16>
    %c0_4 = arith.constant 0 : index
    %c0_5 = arith.constant 0 : index
    %6 = vector.load %arg4[%c0_4, %c0_5] : memref<128x128xbf16, #tpu.memory_space<vmem>>, vector<128x128xbf16>
    %cst = arith.constant dense<0.000000e+00> : vector<32x128xf32>
    %7 = tpu.matmul %5, %6, %cst {dimension_numbers = #tpu.dot_dimension_numbers<[1], [0], [0], [1], [0, 0, 1, 1], [], []>} : vector<32x128xbf16>, vector<128x128xbf16>, vector<32x128xf32> -> vector<32x128xf32>
    %8 = arith.addf %3, %7 : vector<32x128xf32>
    %c0_6 = arith.constant 0 : index
    %c0_7 = arith.constant 0 : index
    %9 = vector.load %arg6[%c0_6, %c0_7] : memref<32x128xf32, #tpu.memory_space<vmem>>, vector<32x128xf32>
    tpu.vector_store %arg6[%c0_6, %c0_7], %8 {strides = array<i32>} : memref<32x128xf32, #tpu.memory_space<vmem>>, vector<32x128xf32>,
    %c0_i32_8 = arith.constant 0 : i32
    %10 = arith.cmpi eq, %arg2, %c0_i32_8 : i32
    %11 = arith.extui %10 : i1 to i32
    %c0_i32_9 = arith.constant 0 : i32
    %12 = arith.cmpi ne, %11, %c0_i32_9 : i32
    scf.if %12 {
      %c0_10 = arith.constant 0 : index
      %c0_11 = arith.constant 0 : index
      %13 = vector.load %arg6[%c0_10, %c0_11] : memref<32x128xf32, #tpu.memory_space<vmem>>, vector<32x128xf32>
      %c0_12 = arith.constant 0 : index
      %c0_13 = arith.constant 0 : index
      %14 = vector.load %arg5[%c0_12, %c0_13] : memref<1x128xf32, #tpu.memory_space<vmem>>, vector<1x128xf32>
      %15 = vector.broadcast %14 : vector<1x128xf32> to vector<32x128xf32>
      %16 = arith.addf %13, %15 : vector<32x128xf32>
      %c0_14 = arith.constant 0 : index
      %c0_15 = arith.constant 0 : index
      %17 = vector.load %arg6[%c0_14, %c0_15] : memref<32x128xf32, #tpu.memory_space<vmem>>, vector<32x128xf32>
      tpu.vector_store %arg6[%c0_14, %c0_15], %16 {strides = array<i32>} : memref<32x128xf32, #tpu.memory_space<vmem>>, vector<32x128xf32>,
    } else {
    }
    return
  }
  func.func @transform_0(%arg0: i32, %arg1: i32, %arg2: i32) -> (i32, i32) {
    %c0_i32 = arith.constant 0 : i32
    return %arg0, %arg2 : i32, i32
  }
  func.func @transform_1(%arg0: i32, %arg1: i32, %arg2: i32) -> (i32, i32) {
    %c0_i32 = arith.constant 0 : i32
    return %arg2, %arg1 : i32, i32
  }
  func.func @transform_2(%arg0: i32, %arg1: i32, %arg2: i32) -> (i32, i32) {
    %c0_i32 = arith.constant 0 : i32
    %c0_i32_0 = arith.constant 0 : i32
    return %c0_i32, %arg1 : i32, i32
  }
  func.func @transform_3(%arg0: i32, %arg1: i32, %arg2: i32) -> (i32, i32) {
    %c0_i32 = arith.constant 0 : i32
    return %arg0, %arg1 : i32, i32
  }
}

module attributes {stable_mosaic.version = 11 : i64} {
  func.func @_attn_kernel(%arg0: i32, %arg1: i32, %arg2: memref<1x8x8xbf16, #tpu.memory_space<vmem>>, %arg3: memref<1x128x8xbf16, #tpu.memory_space<vmem>>, %arg4: memref<1x128x8xbf16, #tpu.memory_space<vmem>>, %arg5: memref<1x8x8xf32, #tpu.memory_space<vmem>>) attributes {dimension_semantics = [#tpu.dimension_semantics<parallel>, #tpu.dimension_semantics<parallel>], iteration_bounds = array<i64: 8, 1>, scalar_prefetch = 0 : i64, scratch_operands = 0 : i64, tpu.core_type = #tpu.core_type<tc>, window_params = [{transform_indices = @transform_0, window_bounds = array<i64: 1, 8, 8>}, {transform_indices = @transform_1, window_bounds = array<i64: 1, 128, 8>}, {transform_indices = @transform_2, window_bounds = array<i64: 1, 128, 8>}, {transform_indices = @transform_3, window_bounds = array<i64: 1, 8, 8>}]} {
    %c0 = arith.constant 0 : index
    %c0_0 = arith.constant 0 : index
    %c0_1 = arith.constant 0 : index
    %0 = vector.load %arg2[%c0, %c0_0, %c0_1] : memref<1x8x8xbf16, #tpu.memory_space<vmem>>, vector<1x8x8xbf16>
    %1 = vector.shape_cast %0 : vector<1x8x8xbf16> to vector<8x8xbf16>
    %c0_2 = arith.constant 0 : index
    %c0_3 = arith.constant 0 : index
    %c0_4 = arith.constant 0 : index
    %2 = vector.load %arg3[%c0_2, %c0_3, %c0_4] : memref<1x128x8xbf16, #tpu.memory_space<vmem>>, vector<1x128x8xbf16>
    %3 = vector.shape_cast %2 : vector<1x128x8xbf16> to vector<128x8xbf16>
    %cst = arith.constant dense<0.000000e+00> : vector<8x128xf32>
    %4 = tpu.matmul %1, %3, %cst {dimension_numbers = #tpu.dot_dimension_numbers<[1], [1], [0], [0], [0, 0, 1, 0], [], []>} : vector<8x8xbf16>, vector<128x8xbf16>, vector<8x128xf32> -> vector<8x128xf32>
    %5 = tpu.iota {dimensions = array<i32: 1>} : vector<8x128xi32>
    %c8_i32 = arith.constant 8 : i32
    %6 = vector.broadcast %c8_i32 : i32 to vector<8x128xi32>
    %7 = arith.cmpi slt, %5, %6 : vector<8x128xi32>
    %cst_5 = arith.constant -1.000000e+30 : f32
    %8 = vector.broadcast %cst_5 : f32 to vector<8x128xf32>
    %9 = arith.select %7, %4, %8 : vector<8x128xi1>, vector<8x128xf32>
    %cst_6 = arith.constant dense<0xFF800000> : vector<8xf32>
    %10 = vector.multi_reduction <maximumf>, %9, %cst_6 [1] : vector<8x128xf32> to vector<8xf32>
    %11 = vector.shape_cast %10 : vector<8xf32> to vector<8x1xf32>
    %12 = vector.broadcast %11 : vector<8x1xf32> to vector<8x128xf32>
    %13 = arith.subf %9, %12 : vector<8x128xf32>
    %14 = math.exp %13 : vector<8x128xf32>
    %cst_7 = arith.constant dense<0.000000e+00> : vector<8xf32>
    %15 = vector.multi_reduction <add>, %14, %cst_7 [1] : vector<8x128xf32> to vector<8xf32>
    %16 = vector.shape_cast %15 : vector<8xf32> to vector<8x1xf32>
    %17 = arith.truncf %14 : vector<8x128xf32> to vector<8x128xbf16>
    %c0_8 = arith.constant 0 : index
    %c0_9 = arith.constant 0 : index
    %c0_10 = arith.constant 0 : index
    %18 = vector.load %arg4[%c0_8, %c0_9, %c0_10] : memref<1x128x8xbf16, #tpu.memory_space<vmem>>, vector<1x128x8xbf16>
    %19 = vector.shape_cast %18 : vector<1x128x8xbf16> to vector<128x8xbf16>
    %cst_11 = arith.constant dense<0.000000e+00> : vector<8x8xf32>
    %20 = tpu.matmul %17, %19, %cst_11 {dimension_numbers = #tpu.dot_dimension_numbers<[1], [0], [0], [1], [0, 0, 1, 1], [], []>} : vector<8x128xbf16>, vector<128x8xbf16>, vector<8x8xf32> -> vector<8x8xf32>
    %21 = tpu.reciprocal %16 {approx = true} : vector<8x1xf32> -> vector<8x1xf32>
    %22 = vector.broadcast %21 : vector<8x1xf32> to vector<8x8xf32>
    %23 = arith.mulf %20, %22 : vector<8x8xf32>
    %c0_12 = arith.constant 0 : index
    %c0_13 = arith.constant 0 : index
    %c0_14 = arith.constant 0 : index
    %24 = vector.load %arg5[%c0_12, %c0_13, %c0_14] : memref<1x8x8xf32, #tpu.memory_space<vmem>>, vector<1x8x8xf32>
    %25 = vector.shape_cast %24 : vector<1x8x8xf32> to vector<8x8xf32>
    %26 = vector.shape_cast %23 : vector<8x8xf32> to vector<1x8x8xf32>
    tpu.vector_store %arg5[%c0_12, %c0_13, %c0_14], %26 {strides = array<i32>} : memref<1x8x8xf32, #tpu.memory_space<vmem>>, vector<1x8x8xf32>,
    return
  }
  func.func @transform_0(%arg0: i32, %arg1: i32) -> (i32, i32, i32) {
    %c0_i32 = arith.constant 0 : i32
    %c0_i32_0 = arith.constant 0 : i32
    return %arg0, %arg1, %c0_i32 : i32, i32, i32
  }
  func.func @transform_1(%arg0: i32, %arg1: i32) -> (i32, i32, i32) {
    %c0_i32 = arith.constant 0 : i32
    %c0_i32_0 = arith.constant 0 : i32
    %c0_i32_1 = arith.constant 0 : i32
    return %arg0, %c0_i32, %c0_i32_0 : i32, i32, i32
  }
  func.func @transform_2(%arg0: i32, %arg1: i32) -> (i32, i32, i32) {
    %c0_i32 = arith.constant 0 : i32
    %c0_i32_0 = arith.constant 0 : i32
    %c0_i32_1 = arith.constant 0 : i32
    return %arg0, %c0_i32, %c0_i32_0 : i32, i32, i32
  }
  func.func @transform_3(%arg0: i32, %arg1: i32) -> (i32, i32, i32) {
    %c0_i32 = arith.constant 0 : i32
    %c0_i32_0 = arith.constant 0 : i32
    return %arg0, %arg1, %c0_i32 : i32, i32, i32
  }
}

module attributes {stable_mosaic.version = 11 : i64} {
  func.func @_layernorm_kernel(%arg0: i32, %arg1: memref<16x32xf32, #tpu.memory_space<vmem>>, %arg2: memref<1x32xf32, #tpu.memory_space<vmem>>, %arg3: memref<1x32xf32, #tpu.memory_space<vmem>>, %arg4: memref<16x32xf32, #tpu.memory_space<vmem>>) attributes {dimension_semantics = [#tpu.dimension_semantics<parallel>], iteration_bounds = array<i64: 1>, scalar_prefetch = 0 : i64, scratch_operands = 0 : i64, tpu.core_type = #tpu.core_type<tc>, window_params = [{transform_indices = @transform_0, window_bounds = array<i64: 16, 32>}, {pipeline_mode = #tpu.pipeline_mode<synchronous>, transform_indices = @transform_1, window_bounds = array<i64: 1, 32>}, {pipeline_mode = #tpu.pipeline_mode<synchronous>, transform_indices = @transform_2, window_bounds = array<i64: 1, 32>}, {transform_indices = @transform_3, window_bounds = array<i64: 16, 32>}]} {
    %c0 = arith.constant 0 : index
    %c0_0 = arith.constant 0 : index
    %0 = vector.load %arg1[%c0, %c0_0] : memref<16x32xf32, #tpu.memory_space<vmem>>, vector<16x32xf32>
    %cst = arith.constant dense<0.000000e+00> : vector<16xf32>
    %1 = vector.multi_reduction <add>, %0, %cst [1] : vector<16x32xf32> to vector<16xf32>
    %2 = vector.shape_cast %1 : vector<16xf32> to vector<16x1xf32>
    %cst_1 = arith.constant 3.200000e+01 : f32
    %3 = vector.broadcast %cst_1 : f32 to vector<16x1xf32>
    %4 = arith.divf %2, %3 : vector<16x1xf32>
    %5 = vector.broadcast %4 : vector<16x1xf32> to vector<16x32xf32>
    %6 = arith.subf %0, %5 : vector<16x32xf32>
    %7 = arith.mulf %6, %6 : vector<16x32xf32>
    %cst_2 = arith.constant dense<0.000000e+00> : vector<16xf32>
    %8 = vector.multi_reduction <add>, %7, %cst_2 [1] : vector<16x32xf32> to vector<16xf32>
    %9 = vector.shape_cast %8 : vector<16xf32> to vector<16x1xf32>
    %cst_3 = arith.constant 3.200000e+01 : f32
    %10 = vector.broadcast %cst_3 : f32 to vector<16x1xf32>
    %11 = arith.divf %9, %10 : vector<16x1xf32>
    %12 = vector.broadcast %4 : vector<16x1xf32> to vector<16x32xf32>
    %13 = arith.subf %0, %12 : vector<16x32xf32>
    %cst_4 = arith.constant 9.99999974E-6 : f32
    %14 = vector.broadcast %cst_4 : f32 to vector<16x1xf32>
    %15 = arith.addf %11, %14 : vector<16x1xf32>
    %16 = math.rsqrt %15 : vector<16x1xf32>
    %17 = vector.broadcast %16 : vector<16x1xf32> to vector<16x32xf32>
    %18 = arith.mulf %13, %17 : vector<16x32xf32>
    %c0_5 = arith.constant 0 : index
    %c0_6 = arith.constant 0 : index
    %19 = vector.load %arg2[%c0_5, %c0_6] : memref<1x32xf32, #tpu.memory_space<vmem>>, vector<1x32xf32>
    %20 = vector.broadcast %19 : vector<1x32xf32> to vector<16x32xf32>
    %21 = arith.mulf %18, %20 : vector<16x32xf32>
    %c0_7 = arith.constant 0 : index
    %c0_8 = arith.constant 0 : index
    %22 = vector.load %arg3[%c0_7, %c0_8] : memref<1x32xf32, #tpu.memory_space<vmem>>, vector<1x32xf32>
    %23 = vector.broadcast %22 : vector<1x32xf32> to vector<16x32xf32>
    %24 = arith.addf %21, %23 : vector<16x32xf32>
    %c0_9 = arith.constant 0 : index
    %c0_10 = arith.constant 0 : index
    %25 = vector.load %arg4[%c0_9, %c0_10] : memref<16x32xf32, #tpu.memory_space<vmem>>, vector<16x32xf32>
    tpu.vector_store %arg4[%c0_9, %c0_10], %24 {strides = array<i32>} : memref<16x32xf32, #tpu.memory_space<vmem>>, vector<16x32xf32>,
    return
  }
  func.func @transform_0(%arg0: i32) -> (i32, i32) {
    %c0_i32 = arith.constant 0 : i32
    %c0_i32_0 = arith.constant 0 : i32
    return %arg0, %c0_i32 : i32, i32
  }
  func.func @transform_1(%arg0: i32) -> (i32, i32) {
    %c0_i32 = arith.constant 0 : i32
    %c0_i32_0 = arith.constant 0 : i32
    %c0_i32_1 = arith.constant 0 : i32
    return %c0_i32, %c0_i32_0 : i32, i32
  }
  func.func @transform_2(%arg0: i32) -> (i32, i32) {
    %c0_i32 = arith.constant 0 : i32
    %c0_i32_0 = arith.constant 0 : i32
    %c0_i32_1 = arith.constant 0 : i32
    return %c0_i32, %c0_i32_0 : i32, i32
  }
  func.func @transform_3(%arg0: i32) -> (i32, i32) {
    %c0_i32 = arith.constant 0 : i32
    %c0_i32_0 = arith.constant 0 : i32
    return %arg0, %c0_i32 : i32, i32
  }
}

module attributes {stable_mosaic.version = 11 : i64} {
  func.func @_ln_matmul_kernel(%arg0: i32, %arg1: i32, %arg2: memref<16x32xf32, #tpu.memory_space<vmem>>, %arg3: memref<1x32xf32, #tpu.memory_space<vmem>>, %arg4: memref<1x32xf32, #tpu.memory_space<vmem>>, %arg5: memref<512x32xbf16, #tpu.memory_space<vmem>>, %arg6: memref<1x512xf32, #tpu.memory_space<vmem>>, %arg7: memref<16x512xf32, #tpu.memory_space<vmem>>, %arg8: memref<16x32xbf16, #tpu.memory_space<vmem>>) attributes {dimension_semantics = [#tpu.dimension_semantics<parallel>, #tpu.dimension_semantics<arbitrary>], iteration_bounds = array<i64: 1, 1>, scalar_prefetch = 0 : i64, scratch_operands = 1 : i64, tpu.core_type = #tpu.core_type<tc>, window_params = [{transform_indices = @transform_0, window_bounds = array<i64: 16, 32>}, {pipeline_mode = #tpu.pipeline_mode<synchronous>, transform_indices = @transform_1, window_bounds = array<i64: 1, 32>}, {pipeline_mode = #tpu.pipeline_mode<synchronous>, transform_indices = @transform_2, window_bounds = array<i64: 1, 32>}, {transform_indices = @transform_3, window_bounds = array<i64: 512, 32>}, {transform_indices = @transform_4, window_bounds = array<i64: 1, 512>}, {transform_indices = @transform_5, window_bounds = array<i64: 16, 512>}]} {
    %c0_i32 = arith.constant 0 : i32
    %0 = arith.cmpi eq, %arg1, %c0_i32 : i32
    %1 = arith.extui %0 : i1 to i32
    %c0_i32_0 = arith.constant 0 : i32
    %2 = arith.cmpi ne, %1, %c0_i32_0 : i32
    scf.if %2 {
      %c0_8 = arith.constant 0 : index
      %c0_9 = arith.constant 0 : index
      %10 = vector.load %arg2[%c0_8, %c0_9] : memref<16x32xf32, #tpu.memory_space<vmem>>, vector<16x32xf32>
      %cst_10 = arith.constant dense<0.000000e+00> : vector<16xf32>
      %11 = vector.multi_reduction <add>, %10, %cst_10 [1] : vector<16x32xf32> to vector<16xf32>
      %12 = vector.shape_cast %11 : vector<16xf32> to vector<16x1xf32>
      %cst_11 = arith.constant 3.200000e+01 : f32
      %13 = vector.broadcast %cst_11 : f32 to vector<16x1xf32>
      %14 = arith.divf %12, %13 : vector<16x1xf32>
      %15 = vector.broadcast %14 : vector<16x1xf32> to vector<16x32xf32>
      %16 = arith.subf %10, %15 : vector<16x32xf32>
      %17 = arith.mulf %16, %16 : vector<16x32xf32>
      %cst_12 = arith.constant dense<0.000000e+00> : vector<16xf32>
      %18 = vector.multi_reduction <add>, %17, %cst_12 [1] : vector<16x32xf32> to vector<16xf32>
      %19 = vector.shape_cast %18 : vector<16xf32> to vector<16x1xf32>
      %cst_13 = arith.constant 3.200000e+01 : f32
      %20 = vector.broadcast %cst_13 : f32 to vector<16x1xf32>
      %21 = arith.divf %19, %20 : vector<16x1xf32>
      %22 = vector.broadcast %14 : vector<16x1xf32> to vector<16x32xf32>
      %23 = arith.subf %10, %22 : vector<16x32xf32>
      %cst_14 = arith.constant 9.99999974E-6 : f32
      %24 = vector.broadcast %cst_14 : f32 to vector<16x1xf32>
      %25 = arith.addf %21, %24 : vector<16x1xf32>
      %26 = math.rsqrt %25 : vector<16x1xf32>
      %27 = vector.broadcast %26 : vector<16x1xf32> to vector<16x32xf32>
      %28 = arith.mulf %23, %27 : vector<16x32xf32>
      %c0_15 = arith.constant 0 : index
      %c0_16 = arith.constant 0 : index
      %29 = vector.load %arg3[%c0_15, %c0_16] : memref<1x32xf32, #tpu.memory_space<vmem>>, vector<1x32xf32>
      %30 = vector.broadcast %29 : vector<1x32xf32> to vector<16x32xf32>
      %31 = arith.mulf %28, %30 : vector<16x32xf32>
      %c0_17 = arith.constant 0 : index
      %c0_18 = arith.constant 0 : index
      %32 = vector.load %arg4[%c0_17, %c0_18] : memref<1x32xf32, #tpu.memory_space<vmem>>, vector<1x32xf32>
      %33 = vector.broadcast %32 : vector<1x32xf32> to vector<16x32xf32>
      %34 = arith.addf %31, %33 : vector<16x32xf32>
      %35 = arith.truncf %34 : vector<16x32xf32> to vector<16x32xbf16>
      %c0_19 = arith.constant 0 : index
      %c0_20 = arith.constant 0 : index
      %36 = vector.load %arg8[%c0_19, %c0_20] : memref<16x32xbf16, #tpu.memory_space<vmem>>, vector<16x32xbf16>
      tpu.vector_store %arg8[%c0_19, %c0_20], %35 {strides = array<i32>} : memref<16x32xbf16, #tpu.memory_space<vmem>>, vector<16x32xbf16>,
    } else {
    }
    %c0 = arith.constant 0 : index
    %c0_1 = arith.constant 0 : index
    %3 = vector.load %arg8[%c0, %c0_1] : memref<16x32xbf16, #tpu.memory_space<vmem>>, vector<16x32xbf16>
    %c0_2 = arith.constant 0 : index
    %c0_3 = arith.constant 0 : index
    %4 = vector.load %arg5[%c0_2, %c0_3] : memref<512x32xbf16, #tpu.memory_space<vmem>>, vector<512x32xbf16>
    %cst = arith.constant dense<0.000000e+00> : vector<16x512xf32>
    %5 = tpu.matmul %3, %4, %cst {dimension_numbers = #tpu.dot_dimension_numbers<[1], [1], [0], [0], [0, 0, 1, 0], [], []>} : vector<16x32xbf16>, vector<512x32xbf16>, vector<16x512xf32> -> vector<16x512xf32>
    %c0_4 = arith.constant 0 : index
    %c0_5 = arith.constant 0 : index
    %6 = vector.load %arg6[%c0_4, %c0_5] : memref<1x512xf32, #tpu.memory_space<vmem>>, vector<1x512xf32>
    %7 = vector.broadcast %6 : vector<1x512xf32> to vector<16x512xf32>
    %8 = arith.addf %5, %7 : vector<16x512xf32>
    %c0_6 = arith.constant 0 : index
    %c0_7 = arith.constant 0 : index
    %9 = vector.load %arg7[%c0_6, %c0_7] : memref<16x512xf32, #tpu.memory_space<vmem>>, vector<16x512xf32>
    tpu.vector_store %arg7[%c0_6, %c0_7], %8 {strides = array<i32>} : memref<16x512xf32, #tpu.memory_space<vmem>>, vector<16x512xf32>,
    return
  }
  func.func @transform_0(%arg0: i32, %arg1: i32) -> (i32, i32) {
    %c0_i32 = arith.constant 0 : i32
    %c0_i32_0 = arith.constant 0 : i32
    return %arg0, %c0_i32 : i32, i32
  }
  func.func @transform_1(%arg0: i32, %arg1: i32) -> (i32, i32) {
    %c0_i32 = arith.constant 0 : i32
    %c0_i32_0 = arith.constant 0 : i32
    %c0_i32_1 = arith.constant 0 : i32
    return %c0_i32, %c0_i32_0 : i32, i32
  }
  func.func @transform_2(%arg0: i32, %arg1: i32) -> (i32, i32) {
    %c0_i32 = arith.constant 0 : i32
    %c0_i32_0 = arith.constant 0 : i32
    %c0_i32_1 = arith.constant 0 : i32
    return %c0_i32, %c0_i32_0 : i32, i32
  }
  func.func @transform_3(%arg0: i32, %arg1: i32) -> (i32, i32) {
    %c0_i32 = arith.constant 0 : i32
    %c0_i32_0 = arith.constant 0 : i32
    return %arg1, %c0_i32 : i32, i32
  }
  func.func @transform_4(%arg0: i32, %arg1: i32) -> (i32, i32) {
    %c0_i32 = arith.constant 0 : i32
    %c0_i32_0 = arith.constant 0 : i32
    return %c0_i32, %arg1 : i32, i32
  }
  func.func @transform_5(%arg0: i32, %arg1: i32) -> (i32, i32) {
    %c0_i32 = arith.constant 0 : i32
    return %arg0, %arg1 : i32, i32
  }
}

</mosaic_0001>

<llo_original>
// kernel: whisper_forward.47
$region0: #{whisper_forward.47}
  #allocation0 [shape = 'u32[]', space=smem, size = 0x4, offset = 0x4, fixed_abs, tag = 'smem constant byte address 0x4 - core index']
  #allocation1 [shape = 'u32[72,128]{1,0:T(1,128)}', space=vmem, size = 0x9000, scoped, tag = 'internal scratch']
  %s0 = inlined_call_operand.vmem [shape: f32[16,128], index: 0, kind: input, shape index: {}]
  %s1 = inlined_call_operand.vmem [shape: bf16[128,128], index: 1, kind: input, shape index: {}]
  %s2 = inlined_call_operand.vmem [shape: f32[1,128], index: 2, kind: input, shape index: {}]
  %s3 = inlined_call_operand.vmem [shape: f32[16,128], index: 3, kind: output, shape index: {}]
  %s4 = sld [smem:[#allocation0]]
  $region30: #{whisper_forward.47} parent=0
    _
  %s6 = ssub.s32 1, %s4
  %s7 = scalar_select 0, %s6, %s4
  // Predicated region
  $region2: #{whisper_forward.47} parent=0 // pred_check
    _
  $region3: #{whisper_forward.47} parent=0 // pred_check_branch
    %9 = sbr.rel (0) target = $region5
  $region4: #{whisper_forward.47} parent=0 // pred_region
    _
  $region5: #{whisper_forward.47} parent=0 // pred_fallthru
    _
  // Predicated region
  $region6: #{whisper_forward.47} parent=0 // pred_check
    _
  $region7: #{whisper_forward.47} parent=0 // pred_check_branch
    %11 = sbr.rel (0) target = $region9
  $region8: #{whisper_forward.47} parent=0 // pred_region
    _
  $region9: #{whisper_forward.47} parent=0 // pred_fallthru
    _
  // Predicated region
  $region10: #{whisper_forward.47} parent=0 // pred_check
    _
  $region11: #{whisper_forward.47} parent=0 // pred_check_branch
    %13 = sbr.rel (0) target = $region13
  $region12: #{whisper_forward.47} parent=0 // pred_region
    _
  $region13: #{whisper_forward.47} parent=0 // pred_fallthru
    _
  %p14 = scmp.eq.s32.totalorder 0, 0
  // Predicated region
  $region14: #{whisper_forward.47} parent=0 // pred_check
    %p15 = pneg %p14
  $region15: #{whisper_forward.47} parent=0 // pred_check_branch
    %17 = sbr.rel (%p15) target = $region17
  $region16: #{whisper_forward.47} parent=0 // pred_region
    %18 = vst [vmem:[%s3] sm:$0xff] 0.0
    %19 = vst [vmem:[%s3 + $0x8] sm:$0xff] 0.0
  $region17: #{whisper_forward.47} parent=0 // pred_fallthru
    _
  %v20 = vld [vmem:[%s3] sm:$0xff]
  %v21 = vld [vmem:[%s3 + $0x8] sm:$0xff]
  %v22 = vld [vmem:[%s0] sm:$0xff]
  %v23 = vld [vmem:[%s0 + $0x8] sm:$0xff]
  %v24 = vpack.c.bf16 %v23, %v22
  %v25 = vld [vmem:[%s1] sm:$0xf]
  %v26 = vld [vmem:[%s1 + $0x4] sm:$0xf]
  %v27 = vld [vmem:[%s1 + $0x8] sm:$0xf]
  %v28 = vld [vmem:[%s1 + $0xc] sm:$0xf]
  %v29 = vld [vmem:[%s1 + $0x10] sm:$0xf]
  %v30 = vld [vmem:[%s1 + $0x14] sm:$0xf]
  %v31 = vld [vmem:[%s1 + $0x18] sm:$0xf]
  %v32 = vld [vmem:[%s1 + $0x1c] sm:$0xf]
  %v33 = vld [vmem:[%s1 + $0x20] sm:$0xf]
  %v34 = vld [vmem:[%s1 + $0x24] sm:$0xf]
  %v35 = vld [vmem:[%s1 + $0x28] sm:$0xf]
  %v36 = vld [vmem:[%s1 + $0x2c] sm:$0xf]
  %v37 = vld [vmem:[%s1 + $0x30] sm:$0xf]
  %v38 = vld [vmem:[%s1 + $0x34] sm:$0xf]
  %v39 = vld [vmem:[%s1 + $0x38] sm:$0xf]
  %v40 = vld [vmem:[%s1 + $0x3c] sm:$0xf]
  %v57 = vunpack.c.l.b16 %v25
  %v58 = vunpack.c.l.b16 %v26
  %v59 = vunpack.c.l.b16 %v27
  %v60 = vunpack.c.l.b16 %v28
  %v61 = vunpack.c.l.b16 %v29
  %v62 = vunpack.c.l.b16 %v30
  %v63 = vunpack.c.l.b16 %v31
  %v64 = vunpack.c.l.b16 %v32
  %v65 = vunpack.c.l.b16 %v33
  %v66 = vunpack.c.l.b16 %v34
  %v67 = vunpack.c.l.b16 %v35
  %v68 = vunpack.c.l.b16 %v36
  %v69 = vunpack.c.l.b16 %v37
  %v70 = vunpack.c.l.b16 %v38
  %v71 = vunpack.c.l.b16 %v39
  %v72 = vunpack.c.l.b16 %v40
  %v73 = vpack.c.b16 %v58, %v57
  %v74 = vpack.c.b16 %v60, %v59
  %v75 = vpack.c.b16 %v62, %v61
  %v76 = vpack.c.b16 %v64, %v63
  %v77 = vpack.c.b16 %v66, %v65
  %v78 = vpack.c.b16 %v68, %v67
  %v79 = vpack.c.b16 %v70, %v69
  %v80 = vpack.c.b16 %v72, %v71
  %89 = vmatpush.bf16.msra.mxu0 %v80
  %90 = vmatpush.bf16.msra.mxu0 %v79
  %91 = vmatpush.bf16.msra.mxu0 %v78
  %92 = vmatpush.bf16.msra.mxu0 %v77
  %93 = vmatpush.bf16.msra.mxu0 %v76
  %94 = vmatpush.bf16.msra.mxu0 %v75
  %95 = vmatpush.bf16.msra.mxu0 %v74
  %96 = vmatpush.bf16.msra.mxu0 %v73
  %97 = vmatmul.bf16.gmra.mxu0 %v24
  %v98 = vpop.f32.mrf.mxu0
  %v99 = vadd.f32 0.0, %v98
  %v100 = vpop.f32.mrf.mxu0
  %v101 = vadd.f32 0.0, %v100
  %102 = vdwg.mxu0
  %v103 = vadd.f32 %v20, %v99
  %v104 = vadd.f32 %v21, %v101
  %105 = vst [vmem:[%s3] sm:$0xff] %v103
  %106 = vst [vmem:[%s3 + $0x8] sm:$0xff] %v104
  // Predicated region
  $region18: #{whisper_forward.47} parent=0 // pred_check
    %p107 = pneg %p14
  $region19: #{whisper_forward.47} parent=0 // pred_check_branch
    %109 = sbr.rel (%p107) target = $region21
  $region20: #{whisper_forward.47} parent=0 // pred_region
    %v110 = vld [vmem:[%s3] sm:$0xff]
    %v111 = vld [vmem:[%s3 + $0x8] sm:$0xff]
    %v112 = vld [vmem:[%s2] sm:$0x1]
    %v114 = vperm.slane %v112, 0
    %v116 = vadd.f32 %v110, %v114
    %v117 = vadd.f32 %v111, %v114
    %118 = vst [vmem:[%s3] sm:$0xff] %v116
    %119 = vst [vmem:[%s3 + $0x8] sm:$0xff] %v117
  $region21: #{whisper_forward.47} parent=0 // pred_fallthru
    _
  // Predicated region
  $region22: #{whisper_forward.47} parent=0 // pred_check
    _
  $region23: #{whisper_forward.47} parent=0 // pred_check_branch
    %121 = sbr.rel (0) target = $region25
  $region24: #{whisper_forward.47} parent=0 // pred_region
    _
  $region25: #{whisper_forward.47} parent=0 // pred_fallthru
    _
  // Predicated region
  $region26: #{whisper_forward.47} parent=0 // pred_check
    _
  $region27: #{whisper_forward.47} parent=0 // pred_check_branch
    %123 = sbr.rel (0) target = $region29
  $region28: #{whisper_forward.47} parent=0 // pred_region
    _
  $region29: #{whisper_forward.47} parent=0 // pred_fallthru
    _

// kernel: whisper_forward.46
$region0: #{whisper_forward.46}
  #allocation0 [shape = 'u32[]', space=smem, size = 0x4, offset = 0x4, fixed_abs, tag = 'smem constant byte address 0x4 - core index']
  #allocation1 [shape = 'u32[72,128]{1,0:T(1,128)}', space=vmem, size = 0x9000, scoped, tag = 'internal scratch']
  %s0 = inlined_call_operand.vmem [shape: bf16[8,8,8], index: 0, kind: input, shape index: {}]
  %s1 = inlined_call_operand.vmem [shape: bf16[8,128,8], index: 1, kind: input, shape index: {}]
  %s2 = inlined_call_operand.vmem [shape: bf16[8,128,8], index: 2, kind: input, shape index: {}]
  %s3 = inlined_call_operand.vmem [shape: f32[8,128], index: 3, kind: input, shape index: {}]
  %s4 = inlined_call_operand.vmem [shape: f32[8,8,8], index: 4, kind: output, shape index: {}]
  %s5 = sld [smem:[#allocation0]]
  $region49: #{whisper_forward.46} parent=0
    _
  %s7 = ssub.s32 1, %s5
  %s8 = scalar_select 0, %s7, %s5
  loop: start=0, step=1, limit=10
  $region2: #{whisper_forward.46} parent=0 // loop_pre_header
    _
  $region3: #{whisper_forward.46} parent=0 // loop_header
    %s10 = sphi 0, %s14
    %p11 = scmp.ge.s32.totalorder %s10, 10
    %s17 = sphi 0, %s29
    %s18 = sphi 0, %s25
    %s19 = sphi 0, %s17
    %s20 = sphi 0, %s18
    %s21 = sphi 0, %s19
    %s22 = sphi 0, %s20
    %s34 = sphi 0, %s36
    %s37 = sphi 0, %s34
    %s38 = sphi 0, %s37
    %s54 = sphi 0, %s38
    %s60 = sphi 0, %s62
    %s63 = sphi 0, %s60
    %s64 = sphi 0, %s63
    %s80 = sphi 0, %s64
    %s86 = sphi 0, %s88
    %s89 = sphi 0, %s86
    %s90 = sphi 0, %s89
    %s106 = sphi 0, %s90
    %s112 = sphi 0, %s114
    %s115 = sphi 0, %s112
    %s116 = sphi 0, %s115
    %s132 = sphi 0, %s116
    %s140 = sphi 0, %s142
    %s143 = sphi 0, %s140
    %s144 = sphi 0, %s143
    %s160 = sphi 0, %s144
  $region4: #{whisper_forward.46} parent=0 // loop_header_branch
    %13 = sbr.rel (%p11) target = $region8
  $region5: #{whisper_forward.46} parent=0 // loop_body
    %s15 = ssub.s32 %s10, 1
    %s16 = ssub.s32 %s10, 2
    %s23 = sadd.s32 1, %s18
    %p24 = scmp.ge.s32.totalorder %s23, 1
    %s25 = scalar_select %p24, 0, %s23
    %s26 = sadd.s32 1, %s17
    %s27 = scalar_select %p24, %s26, %s17
    %p28 = scmp.ge.s32.totalorder %s27, 8
    %s29 = scalar_select %p28, 0, %s27
    %s30 = ssub.s32 %s17, %s29
    %s31 = ssub.s32 %s18, %s25
    %s32 = sor.u32 %s30, %s31
    %p33 = scmp.eq.s32.totalorder %s32, 0
    %s35 = sadd.s32 %s34, 1
    %s36 = scalar_select %p33, %s34, %s35
    %p39 = pneg %p33
    %p40 = scmp.eq.s32.totalorder %s10, 7
    %p41 = por %p39, %p40
    %p42 = scmp.ne.s32.totalorder %s34, %s37
    %p43 = scmp.eq.s32.totalorder %s10, 0
    %p44 = por %p42, %p43
    %p45 = scmp.ne.s32.totalorder %s34, %s37
    %p46 = scmp.eq.s32.totalorder %s15, 7
    %p47 = por %p45, %p46
    %p48 = scmp.ne.s32.totalorder %s37, %s38
    %p49 = scmp.eq.s32.totalorder %s15, 0
    %p50 = por %p48, %p49
    %p51 = scmp.ne.s32.totalorder %s37, %s38
    %p52 = scmp.eq.s32.totalorder %s16, 7
    %p53 = por %p51, %p52
    %p55 = scmp.ne.s32.totalorder %s38, %s54
    %p56 = scmp.eq.s32.totalorder %s16, 0
    %p57 = por %p55, %p56
    %s58 = ssub.s32 %s17, %s29
    %p59 = scmp.eq.s32.totalorder %s58, 0
    %s61 = sadd.s32 %s60, 1
    %s62 = scalar_select %p59, %s60, %s61
    %p65 = pneg %p59
    %p66 = scmp.eq.s32.totalorder %s10, 7
    %p67 = por %p65, %p66
    %p68 = scmp.ne.s32.totalorder %s60, %s63
    %p69 = scmp.eq.s32.totalorder %s10, 0
    %p70 = por %p68, %p69
    %p71 = scmp.ne.s32.totalorder %s60, %s63
    %p72 = scmp.eq.s32.totalorder %s15, 7
    %p73 = por %p71, %p72
    %p74 = scmp.ne.s32.totalorder %s63, %s64
    %p75 = scmp.eq.s32.totalorder %s15, 0
    %p76 = por %p74, %p75
    %p77 = scmp.ne.s32.totalorder %s63, %s64
    %p78 = scmp.eq.s32.totalorder %s16, 7
    %p79 = por %p77, %p78
    %p81 = scmp.ne.s32.totalorder %s64, %s80
    %p82 = scmp.eq.s32.totalorder %s16, 0
    %p83 = por %p81, %p82
    %s84 = ssub.s32 %s17, %s29
    %p85 = scmp.eq.s32.totalorder %s84, 0
    %s87 = sadd.s32 %s86, 1
    %s88 = scalar_select %p85, %s86, %s87
    %p91 = pneg %p85
    %p92 = scmp.eq.s32.totalorder %s10, 7
    %p93 = por %p91, %p92
    %p94 = scmp.ne.s32.totalorder %s86, %s89
    %p95 = scmp.eq.s32.totalorder %s10, 0
    %p96 = por %p94, %p95
    %p97 = scmp.ne.s32.totalorder %s86, %s89
    %p98 = scmp.eq.s32.totalorder %s15, 7
    %p99 = por %p97, %p98
    %p100 = scmp.ne.s32.totalorder %s89, %s90
    %p101 = scmp.eq.s32.totalorder %s15, 0
    %p102 = por %p100, %p101
    %p103 = scmp.ne.s32.totalorder %s89, %s90
    %p104 = scmp.eq.s32.totalorder %s16, 7
    %p105 = por %p103, %p104
    %p107 = scmp.ne.s32.totalorder %s90, %s106
    %p108 = scmp.eq.s32.totalorder %s16, 0
    %p109 = por %p107, %p108
    %s110 = ssub.s32 %s18, %s25
    %p111 = scmp.eq.s32.totalorder %s110, 0
    %s113 = sadd.s32 %s112, 1
    %s114 = scalar_select %p111, %s112, %s113
    %p117 = pneg %p111
    %p118 = scmp.eq.s32.totalorder %s10, 7
    %p119 = por %p117, %p118
    %p120 = scmp.ne.s32.totalorder %s112, %s115
    %p121 = scmp.eq.s32.totalorder %s10, 0
    %p122 = por %p120, %p121
    %p123 = scmp.ne.s32.totalorder %s112, %s115
    %p124 = scmp.eq.s32.totalorder %s15, 7
    %p125 = por %p123, %p124
    %p126 = scmp.ne.s32.totalorder %s115, %s116
    %p127 = scmp.eq.s32.totalorder %s15, 0
    %p128 = por %p126, %p127
    %p129 = scmp.ne.s32.totalorder %s115, %s116
    %p130 = scmp.eq.s32.totalorder %s16, 7
    %p131 = por %p129, %p130
    %p133 = scmp.ne.s32.totalorder %s116, %s132
    %p134 = scmp.eq.s32.totalorder %s16, 0
    %p135 = por %p133, %p134
    %s136 = ssub.s32 %s17, %s29
    %s137 = ssub.s32 %s18, %s25
    %s138 = sor.u32 %s136, %s137
    %p139 = scmp.eq.s32.totalorder %s138, 0
    %s141 = sadd.s32 %s140, 1
    %s142 = scalar_select %p139, %s140, %s141
    %p145 = pneg %p139
    %p146 = scmp.eq.s32.totalorder %s10, 7
    %p147 = por %p145, %p146
    %p148 = scmp.ne.s32.totalorder %s140, %s143
    %p149 = scmp.eq.s32.totalorder %s10, 0
    %p150 = por %p148, %p149
    %p151 = scmp.ne.s32.totalorder %s140, %s143
    %p152 = scmp.eq.s32.totalorder %s15, 7
    %p153 = por %p151, %p152
    %p154 = scmp.ne.s32.totalorder %s143, %s144
    %p155 = scmp.eq.s32.totalorder %s15, 0
    %p156 = por %p154, %p155
    %p157 = scmp.ne.s32.totalorder %s143, %s144
    %p158 = scmp.eq.s32.totalorder %s16, 7
    %p159 = por %p157, %p158
    %p161 = scmp.ne.s32.totalorder %s144, %s160
    %p162 = scmp.eq.s32.totalorder %s16, 0
    %p163 = por %p161, %p162
    %p164 = scmp.le.s32.totalorder 1, %s10
    %p165 = scmp.lt.s32.totalorder %s10, 9
    %p166 = pnand %p164, %p165
    %p167 = pneg %p166
    // Predicated region
    $region9: #{whisper_forward.46} parent=5 // pred_check
      _
    $region10: #{whisper_forward.46} parent=5 // pred_check_branch
      %169 = sbr.rel (%p166) target = $region12
    $region11: #{whisper_forward.46} parent=5 // pred_region
      %s170 = ssub.s32 %s10, 1
      // Predicated region
      $region13: #{whisper_forward.46} parent=11 // pred_check
        %p171 = pneg %p128
      $region14: #{whisper_forward.46} parent=11 // pred_check_branch
        %173 = sbr.rel (%p171) target = $region16
      $region15: #{whisper_forward.46} parent=11 // pred_region
        %p174 = scmp.lt.s32.totalorder %s20, 0
        %s175 = scalar_select %p174, %s20, 0
        %s176 = smul.addr %s175, 8
        %s177 = scalar_lea.vmem %s3, %s176
      $region16: #{whisper_forward.46} parent=11 // pred_fallthru
        _
    $region12: #{whisper_forward.46} parent=5 // pred_fallthru
      _
    %p178 = scmp.lt.s32.totalorder %s10, 8
    // Predicated region
    $region17: #{whisper_forward.46} parent=5 // pred_check
      %p179 = pneg %p178
    $region18: #{whisper_forward.46} parent=5 // pred_check_branch
      %181 = sbr.rel (%p179) target = $region20
    $region19: #{whisper_forward.46} parent=5 // pred_region
      // Predicated region
      $region21: #{whisper_forward.46} parent=19 // pred_check
        %p182 = pneg %p44
      $region22: #{whisper_forward.46} parent=19 // pred_check_branch
        %184 = sbr.rel (%p182) target = $region24
      $region23: #{whisper_forward.46} parent=19 // pred_region
        %p185 = scmp.lt.s32.totalorder %s17, 7
        %s186 = scalar_select %p185, %s17, 7
        %p187 = scmp.lt.s32.totalorder %s18, 0
        %s188 = scalar_select %p187, %s18, 0
        %s189 = sadd.s32 %s188, %s186
        %s190 = smul.addr %s189, 4
        %s191 = scalar_lea.vmem %s0, %s190
      $region24: #{whisper_forward.46} parent=19 // pred_fallthru
        _
      // Predicated region
      $region25: #{whisper_forward.46} parent=19 // pred_check
        %p192 = pneg %p70
      $region26: #{whisper_forward.46} parent=19 // pred_check_branch
        %194 = sbr.rel (%p192) target = $region28
      $region27: #{whisper_forward.46} parent=19 // pred_region
        %p195 = scmp.lt.s32.totalorder %s17, 7
        %s196 = scalar_select %p195, %s17, 7
        %s197 = smul.addr %s196, 16
        %s198 = smul.addr %s197, 4
        %s199 = scalar_lea.vmem %s1, %s198
      $region28: #{whisper_forward.46} parent=19 // pred_fallthru
        _
      // Predicated region
      $region29: #{whisper_forward.46} parent=19 // pred_check
        %p200 = pneg %p96
      $region30: #{whisper_forward.46} parent=19 // pred_check_branch
        %202 = sbr.rel (%p200) target = $region32
      $region31: #{whisper_forward.46} parent=19 // pred_region
        %p203 = scmp.lt.s32.totalorder %s17, 7
        %s204 = scalar_select %p203, %s17, 7
        %s205 = smul.addr %s204, 16
        %s206 = smul.addr %s205, 4
        %s207 = scalar_lea.vmem %s2, %s206
      $region32: #{whisper_forward.46} parent=19 // pred_fallthru
        _
    $region20: #{whisper_forward.46} parent=5 // pred_fallthru
      _
    %p208 = scmp.le.s32.totalorder 1, %s10
    %p209 = scmp.lt.s32.totalorder %s10, 9
    %p210 = pnand %p208, %p209
    %p211 = pneg %p210
    // Predicated region
    $region33: #{whisper_forward.46} parent=5 // pred_check
      _
    $region34: #{whisper_forward.46} parent=5 // pred_check_branch
      %213 = sbr.rel (%p210) target = $region36
    $region35: #{whisper_forward.46} parent=5 // pred_region
      %s214 = ssub.s32 %s10, 1
      %p215 = scmp.lt.s32.totalorder %s19, 7
      %s216 = scalar_select %p215, %s19, 7
      %p217 = scmp.lt.s32.totalorder %s20, 0
      %s218 = scalar_select %p217, %s20, 0
      %s219 = sadd.s32 %s218, %s216
      %s220 = smul.addr %s219, 4
      %s221 = scalar_lea.vmem %s0, %s220
      %p222 = pneg %p50
      %p223 = pneg %p47
      %p224 = scmp.lt.s32.totalorder %s19, 7
      %s225 = scalar_select %p224, %s19, 7
      %s226 = smul.addr %s225, 16
      %s227 = smul.addr %s226, 4
      %s228 = scalar_lea.vmem %s1, %s227
      %p229 = pneg %p76
      %p230 = pneg %p73
      %p231 = scmp.lt.s32.totalorder %s19, 7
      %s232 = scalar_select %p231, %s19, 7
      %s233 = smul.addr %s232, 16
      %s234 = smul.addr %s233, 4
      %s235 = scalar_lea.vmem %s2, %s234
      %p236 = pneg %p102
      %p237 = pneg %p99
      %p238 = scmp.lt.s32.totalorder %s20, 0
      %s239 = scalar_select %p238, %s20, 0
      %s240 = smul.addr %s239, 8
      %s241 = scalar_lea.vmem %s3, %s240
      %p242 = pneg %p128
      %p243 = pneg %p125
      %p244 = pneg %p156
      %p245 = pneg %p153
      %p246 = scmp.lt.s32.totalorder %s19, 7
      %s247 = scalar_select %p246, %s19, 7
      %p248 = scmp.lt.s32.totalorder %s20, 0
      %s249 = scalar_select %p248, %s20, 0
      %s250 = sadd.s32 %s249, %s247
      %s251 = smul.addr %s250, 8
      %s252 = scalar_lea.vmem %s4, %s251
      %p253 = scmp.lt.s32.totalorder %s19, 7
      %s254 = scalar_select %p253, %s19, 7
      %p255 = scmp.lt.s32.totalorder %s20, 0
      %s256 = scalar_select %p255, %s20, 0
      %s257 = sadd.s32 %s256, %s254
      %s258 = smul.addr %s257, 4
      %s259 = scalar_lea.vmem %s0, %s258
      %p260 = scmp.lt.s32.totalorder %s19, 7
      %s261 = scalar_select %p260, %s19, 7
      %s262 = smul.addr %s261, 16
      %s263 = smul.addr %s262, 4
      %s264 = scalar_lea.vmem %s1, %s263
      %p265 = scmp.lt.s32.totalorder %s19, 7
      %s266 = scalar_select %p265, %s19, 7
      %s267 = smul.addr %s266, 16
      %s268 = smul.addr %s267, 4
      %s269 = scalar_lea.vmem %s2, %s268
      %p270 = scmp.lt.s32.totalorder %s20, 0
      %s271 = scalar_select %p270, %s20, 0
      %s272 = smul.addr %s271, 8
      %s273 = scalar_lea.vmem %s3, %s272
      %p274 = scmp.lt.s32.totalorder %s19, 7
      %s275 = scalar_select %p274, %s19, 7
      %p276 = scmp.lt.s32.totalorder %s20, 0
      %s277 = scalar_select %p276, %s20, 0
      %s278 = sadd.s32 %s277, %s275
      %s279 = smul.addr %s278, 8
      %s280 = scalar_lea.vmem %s4, %s279
      %v281 = vld [vmem:[%s259] sm:$0xf]
      %v282 = vld [vmem:[%s264] sm:$0xf]
      %v283 = vld [vmem:[%s264 + $0x4] sm:$0xf]
      %v284 = vld [vmem:[%s264 + $0x8] sm:$0xf]
      %v285 = vld [vmem:[%s264 + $0xc] sm:$0xf]
      %v286 = vld [vmem:[%s264 + $0x10] sm:$0xf]
      %v287 = vld [vmem:[%s264 + $0x14] sm:$0xf]
      %v288 = vld [vmem:[%s264 + $0x18] sm:$0xf]
      %v289 = vld [vmem:[%s264 + $0x1c] sm:$0xf]
      %v290 = vld [vmem:[%s264 + $0x20] sm:$0xf]
      %v291 = vld [vmem:[%s264 + $0x24] sm:$0xf]
      %v292 = vld [vmem:[%s264 + $0x28] sm:$0xf]
      %v293 = vld [vmem:[%s264 + $0x2c] sm:$0xf]
      %v294 = vld [vmem:[%s264 + $0x30] sm:$0xf]
      %v295 = vld [vmem:[%s264 + $0x34] sm:$0xf]
      %v296 = vld [vmem:[%s264 + $0x38] sm:$0xf]
      %v297 = vld [vmem:[%s264 + $0x3c] sm:$0xf]
      %v298 = vld [vmem:[%s273] sm:$0xff]
      %v315 = vunpack.c.l.b16 %v282
      %v316 = vunpack.c.l.b16 %v283
      %v317 = vunpack.c.l.b16 %v284
      %v318 = vunpack.c.l.b16 %v285
      %v319 = vunpack.c.l.b16 %v286
      %v320 = vunpack.c.l.b16 %v287
      %v321 = vunpack.c.l.b16 %v288
      %v322 = vunpack.c.l.b16 %v289
      %v323 = vunpack.c.l.b16 %v290
      %v324 = vunpack.c.l.b16 %v291
      %v325 = vunpack.c.l.b16 %v292
      %v326 = vunpack.c.l.b16 %v293
      %v327 = vunpack.c.l.b16 %v294
      %v328 = vunpack.c.l.b16 %v295
      %v329 = vunpack.c.l.b16 %v296
      %v330 = vunpack.c.l.b16 %v297
      %v331 = vpack.c.b16 %v316, %v315
      %v332 = vpack.c.b16 %v318, %v317
      %v333 = vpack.c.b16 %v320, %v319
      %v334 = vpack.c.b16 %v322, %v321
      %v335 = vpack.c.b16 %v324, %v323
      %v336 = vpack.c.b16 %v326, %v325
      %v337 = vpack.c.b16 %v328, %v327
      %v338 = vpack.c.b16 %v330, %v329
      %vm339 = vcmask 64512
      %v341 = vsel %vm339, %v281, 0
      %v344 = vsel %vm339, %v331, 0
      %v347 = vsel %vm339, %v332, 0
      %v350 = vsel %vm339, %v333, 0
      %v353 = vsel %vm339, %v334, 0
      %v356 = vsel %vm339, %v335, 0
      %v359 = vsel %vm339, %v336, 0
      %v362 = vsel %vm339, %v337, 0
      %v365 = vsel %vm339, %v338, 0
      %367 = vmatpush.bf16.xpose.msra.mxu0 %v365
      %368 = vmatpush.bf16.xpose.msra.mxu0 %v362
      %369 = vmatpush.bf16.xpose.msra.mxu0 %v359
      %370 = vmatpush.bf16.xpose.msra.mxu0 %v356
      %371 = vmatpush.bf16.xpose.msra.mxu0 %v353
      %372 = vmatpush.bf16.xpose.msra.mxu0 %v350
      %373 = vmatpush.bf16.xpose.msra.mxu0 %v347
      %374 = vmatpush.bf16.xpose.msra.mxu0 %v344
      %375 = vmatmul.bf16.gmra.mxu0 %v341
      %v376 = vpop.f32.mrf.mxu0
      %v377 = vadd.f32 %v298, %v376
      %v378 = vpop.f32.mrf.mxu0
      %379 = vdwg.mxu0
      %v380 = vlaneseq
      %v381 = vand.u32 %v380, 127
      %vm382 = vcmp.lt.s32.totalorder %v381, 8
      %v383 = vsel %vm382, %v377, -1e+30
      %384 = vmax.xlane.f32.xlu0 %v383
      %v385 = vpop.xlane.xlu0 %384
      %v386 = vsub.f32 %v383, %v385
      %v387 = vmul.f32 %v386, 1.442695
      %v388 = vpow.pop %v387
      %389 = vadd.xlane.f32.xlu0 %v388
      %v390 = vpop.xlane.xlu0 %389
      %v391 = vpack.c.bf16 %v388, %v388
      %v392 = vld [vmem:[%s269] sm:$0xf]
      %v393 = vld [vmem:[%s269 + $0x4] sm:$0xf]
      %v394 = vld [vmem:[%s269 + $0x8] sm:$0xf]
      %v395 = vld [vmem:[%s269 + $0xc] sm:$0xf]
      %v396 = vld [vmem:[%s269 + $0x10] sm:$0xf]
      %v397 = vld [vmem:[%s269 + $0x14] sm:$0xf]
      %v398 = vld [vmem:[%s269 + $0x18] sm:$0xf]
      %v399 = vld [vmem:[%s269 + $0x1c] sm:$0xf]
      %v400 = vld [vmem:[%s269 + $0x20] sm:$0xf]
      %v401 = vld [vmem:[%s269 + $0x24] sm:$0xf]
      %v402 = vld [vmem:[%s269 + $0x28] sm:$0xf]
      %v403 = vld [vmem:[%s269 + $0x2c] sm:$0xf]
      %v404 = vld [vmem:[%s269 + $0x30] sm:$0xf]
      %v405 = vld [vmem:[%s269 + $0x34] sm:$0xf]
      %v406 = vld [vmem:[%s269 + $0x38] sm:$0xf]
      %v407 = vld [vmem:[%s269 + $0x3c] sm:$0xf]
      %v424 = vunpack.c.l.b16 %v392
      %v425 = vunpack.c.l.b16 %v393
      %v426 = vunpack.c.l.b16 %v394
      %v427 = vunpack.c.l.b16 %v395
      %v428 = vunpack.c.l.b16 %v396
      %v429 = vunpack.c.l.b16 %v397
      %v430 = vunpack.c.l.b16 %v398
      %v431 = vunpack.c.l.b16 %v399
      %v432 = vunpack.c.l.b16 %v400
      %v433 = vunpack.c.l.b16 %v401
      %v434 = vunpack.c.l.b16 %v402
      %v435 = vunpack.c.l.b16 %v403
      %v436 = vunpack.c.l.b16 %v404
      %v437 = vunpack.c.l.b16 %v405
      %v438 = vunpack.c.l.b16 %v406
      %v439 = vunpack.c.l.b16 %v407
      %v440 = vpack.c.b16 %v425, %v424
      %v441 = vpack.c.b16 %v427, %v426
      %v442 = vpack.c.b16 %v429, %v428
      %v443 = vpack.c.b16 %v431, %v430
      %v444 = vpack.c.b16 %v433, %v432
      %v445 = vpack.c.b16 %v435, %v434
      %v446 = vpack.c.b16 %v437, %v436
      %v447 = vpack.c.b16 %v439, %v438
      %456 = vmatpush.bf16.msra.mxu0 %v447
      %457 = vmatpush.bf16.msra.mxu0 %v446
      %458 = vmatpush.bf16.msra.mxu0 %v445
      %459 = vmatpush.bf16.msra.mxu0 %v444
      %460 = vmatpush.bf16.msra.mxu0 %v443
      %461 = vmatpush.bf16.msra.mxu0 %v442
      %462 = vmatpush.bf16.msra.mxu0 %v441
      %463 = vmatpush.bf16.msra.mxu0 %v440
      %464 = vmatmul.bf16.gmra.mxu0 %v391
      %v465 = vpop.f32.mrf.mxu0
      %v466 = vadd.f32 0.0, %v465
      %v467 = vpop.f32.mrf.mxu0
      %468 = vdwg.mxu0
      %v469 = vrcp.pop %v390
      %v470 = vmul.f32 %v466, %v469
      %471 = vst.msk [vmem:[%s280] sm:$0xff] %vm339, %v470
      %p472 = scmp.lt.s32.totalorder %s19, 7
      %s473 = scalar_select %p472, %s19, 7
      %p474 = scmp.lt.s32.totalorder %s20, 0
      %s475 = scalar_select %p474, %s20, 0
      %s476 = sadd.s32 %s475, %s473
      %s477 = smul.addr %s476, 8
      %s478 = scalar_lea.vmem %s4, %s477
      // Predicated region
      $region37: #{whisper_forward.46} parent=35 // pred_check
        %p479 = pneg %p153
      $region38: #{whisper_forward.46} parent=35 // pred_check_branch
        %481 = sbr.rel (%p479) target = $region40
      $region39: #{whisper_forward.46} parent=35 // pred_region
        _
      $region40: #{whisper_forward.46} parent=35 // pred_fallthru
        _
    $region36: #{whisper_forward.46} parent=5 // pred_fallthru
      _
    %p482 = scmp.le.s32.totalorder 2, %s10
    // Predicated region
    $region41: #{whisper_forward.46} parent=5 // pred_check
      %p483 = pneg %p482
    $region42: #{whisper_forward.46} parent=5 // pred_check_branch
      %485 = sbr.rel (%p483) target = $region44
    $region43: #{whisper_forward.46} parent=5 // pred_region
      %s486 = ssub.s32 %s10, 2
      // Predicated region
      $region45: #{whisper_forward.46} parent=43 // pred_check
        %p487 = pneg %p159
      $region46: #{whisper_forward.46} parent=43 // pred_check_branch
        %489 = sbr.rel (%p487) target = $region48
      $region47: #{whisper_forward.46} parent=43 // pred_region
        %p490 = scmp.lt.s32.totalorder %s21, 7
        %s491 = scalar_select %p490, %s21, 7
        %p492 = scmp.lt.s32.totalorder %s22, 0
        %s493 = scalar_select %p492, %s22, 0
        %s494 = sadd.s32 %s493, %s491
        %s495 = smul.addr %s494, 8
        %s496 = scalar_lea.vmem %s4, %s495
      $region48: #{whisper_forward.46} parent=43 // pred_fallthru
        _
    $region44: #{whisper_forward.46} parent=5 // pred_fallthru
      _
  $region6: #{whisper_forward.46} parent=0 // loop_footer
    %s14 = sadd.s32 1, %s10
  $region7: #{whisper_forward.46} parent=0 // loop_footer_branch
    %9 = sbr.rel target = $region3
  $region8: #{whisper_forward.46} parent=0 // loop_exit
    _

// kernel: whisper_forward.45
$region0: #{whisper_forward.45}
  #allocation0 [shape = 'u32[]', space=smem, size = 0x4, offset = 0x4, fixed_abs, tag = 'smem constant byte address 0x4 - core index']
  #allocation1 [shape = 'u32[72,128]{1,0:T(1,128)}', space=vmem, size = 0x9000, scoped, tag = 'internal scratch']
  #allocation2 [shape = 'bf16[16,32]{1,0:T(8,128)(2,1)}', space=vmem, size = 0x1000, scoped, tag = 'scratch operand']
  %s0 = inlined_call_operand.vmem [shape: f32[16,32], index: 0, kind: input, shape index: {}]
  %s1 = inlined_call_operand.vmem [shape: f32[1,32], index: 1, kind: input, shape index: {}]
  %s2 = inlined_call_operand.vmem [shape: f32[1,32], index: 2, kind: input, shape index: {}]
  %s3 = inlined_call_operand.vmem [shape: bf16[32,128], index: 3, kind: input, shape index: {}]
  %s4 = inlined_call_operand.vmem [shape: f32[1,128], index: 4, kind: input, shape index: {}]
  %s5 = inlined_call_operand.vmem [shape: f32[16,128], index: 5, kind: output, shape index: {}]
  %s6 = sld [smem:[#allocation0]]
  $region34: #{whisper_forward.45} parent=0
    _
  %s8 = ssub.s32 1, %s6
  %s9 = scalar_select 0, %s8, %s6
  // Predicated region
  $region2: #{whisper_forward.45} parent=0 // pred_check
    _
  $region3: #{whisper_forward.45} parent=0 // pred_check_branch
    %11 = sbr.rel (0) target = $region5
  $region4: #{whisper_forward.45} parent=0 // pred_region
    _
  $region5: #{whisper_forward.45} parent=0 // pred_fallthru
    _
  // Predicated region
  $region6: #{whisper_forward.45} parent=0 // pred_check
    _
  $region7: #{whisper_forward.45} parent=0 // pred_check_branch
    %13 = sbr.rel (0) target = $region9
  $region8: #{whisper_forward.45} parent=0 // pred_region
    _
  $region9: #{whisper_forward.45} parent=0 // pred_fallthru
    _
  // Predicated region
  $region10: #{whisper_forward.45} parent=0 // pred_check
    _
  $region11: #{whisper_forward.45} parent=0 // pred_check_branch
    %15 = sbr.rel (0) target = $region13
  $region12: #{whisper_forward.45} parent=0 // pred_region
    _
  $region13: #{whisper_forward.45} parent=0 // pred_fallthru
    _
  // Predicated region
  $region14: #{whisper_forward.45} parent=0 // pred_check
    _
  $region15: #{whisper_forward.45} parent=0 // pred_check_branch
    %17 = sbr.rel (0) target = $region17
  $region16: #{whisper_forward.45} parent=0 // pred_region
    _
  $region17: #{whisper_forward.45} parent=0 // pred_fallthru
    _
  // Predicated region
  $region18: #{whisper_forward.45} parent=0 // pred_check
    _
  $region19: #{whisper_forward.45} parent=0 // pred_check_branch
    %19 = sbr.rel (0) target = $region21
  $region20: #{whisper_forward.45} parent=0 // pred_region
    _
  $region21: #{whisper_forward.45} parent=0 // pred_fallthru
    _
  %p21 = scmp.eq.s32.totalorder 0, 0
  // Predicated region
  $region22: #{whisper_forward.45} parent=0 // pred_check
    %p22 = pneg %p21
  $region23: #{whisper_forward.45} parent=0 // pred_check_branch
    %24 = sbr.rel (%p22) target = $region25
  $region24: #{whisper_forward.45} parent=0 // pred_region
    %v25 = vld [vmem:[%s0] sm:$0xff]
    %v26 = vld [vmem:[%s0 + $0x8] sm:$0xff]
    %vm27 = vcmask 261120
    %v28 = vsel %vm27, %v25, 0.0
    %29 = vadd.xlane.f32.xlu0 %v28
    %v30 = vpop.xlane.xlu0 %29
    %v31 = vsel %vm27, %v26, 0.0
    %32 = vadd.xlane.f32.xlu0 %v31
    %v33 = vpop.xlane.xlu0 %32
    %v34 = vrcp.pop 32.0
    %v35 = vmul.f32 32.0, %v34
    %v36 = vsub.f32 1.0, %v35
    %v37 = vmul.f32 %v34, %v36
    %v38 = vadd.f32 %v34, %v37
    %vm39 = vweird.f32 %v34
    %v40 = vsel %vm39, %v34, %v38
    %v41 = vmul.f32 %v30, %v40
    %v42 = vmul.f32 %v33, %v40
    %v43 = vsub.f32 %v25, %v41
    %v44 = vsub.f32 %v26, %v42
    %v45 = vmul.f32 %v43, %v43
    %v46 = vmul.f32 %v44, %v44
    %v47 = vsel %vm27, %v45, 0.0
    %48 = vadd.xlane.f32.xlu0 %v47
    %v49 = vpop.xlane.xlu0 %48
    %v50 = vsel %vm27, %v46, 0.0
    %51 = vadd.xlane.f32.xlu0 %v50
    %v52 = vpop.xlane.xlu0 %51
    %v53 = vmul.f32 %v49, %v40
    %v54 = vmul.f32 %v52, %v40
    %v55 = vadd.f32 %v53, 1e-05
    %v56 = vadd.f32 %v54, 1e-05
    %v57 = vrsqrt.pop %v55
    %v58 = vmul.f32 %v57, %v55
    %v59 = vmul.f32 %v58, %v57
    %v60 = vmul.f32 0.5, %v59
    %v61 = vsub.f32 1.5, %v60
    %v62 = vmul.f32 %v57, %v61
    %vm63 = vweird.f32 %v55
    %vm64 = vweird.f32 %v57
    %vm65 = vmor %vm63, %vm64
    %v66 = vsel %vm65, %v57, %v62
    %v67 = vrsqrt.pop %v56
    %v68 = vmul.f32 %v67, %v56
    %v69 = vmul.f32 %v68, %v67
    %v70 = vmul.f32 0.5, %v69
    %v71 = vsub.f32 1.5, %v70
    %v72 = vmul.f32 %v67, %v71
    %vm73 = vweird.f32 %v56
    %vm74 = vweird.f32 %v67
    %vm75 = vmor %vm73, %vm74
    %v76 = vsel %vm75, %v67, %v72
    %v77 = vmul.f32 %v43, %v66
    %v78 = vmul.f32 %v44, %v76
    %v79 = vld [vmem:[%s1] sm:$0x1]
    %v81 = vperm.slane %v79, 0
    %v83 = vmul.f32 %v77, %v81
    %v84 = vmul.f32 %v78, %v81
    %v85 = vld [vmem:[%s2] sm:$0x1]
    %v87 = vperm.slane %v85, 0
    %v89 = vadd.f32 %v83, %v87
    %v90 = vadd.f32 %v84, %v87
    %v91 = vpack.c.bf16 %v89, %v89
    %v92 = vpack.c.bf16 %v90, %v90
    %vm93 = vcmask 257024
    %94 = vst.msk [vmem:[#allocation2] sm:$0xf] %vm93, %v91
    %95 = vst.msk [vmem:[#allocation2 + $0x4] sm:$0xf] %vm93, %v92
  $region25: #{whisper_forward.45} parent=0 // pred_fallthru
    _
  %v96 = vld [vmem:[#allocation2] sm:$0xf]
  %v97 = vld [vmem:[#allocation2 + $0x4] sm:$0xf]
  %v98 = vld [vmem:[%s3] sm:$0xf]
  %v99 = vld [vmem:[%s3 + $0x4] sm:$0xf]
  %v100 = vld [vmem:[%s3 + $0x8] sm:$0xf]
  %v101 = vld [vmem:[%s3 + $0xc] sm:$0xf]
  %v102 = vld [vmem:[%s4] sm:$0x1]
  %v104 = vperm.slane %v102, 0
  %v108 = vunpack.c.l.b16 %v96
  %v109 = vunpack.c.l.b16 %v97
  %v110 = vpack.c.b16 %v109, %v108
  %v115 = vunpack.c.l.b16 %v98
  %v116 = vunpack.c.l.b16 %v99
  %v117 = vunpack.c.l.b16 %v100
  %v118 = vunpack.c.l.b16 %v101
  %v119 = vpack.c.b16 %v116, %v115
  %v120 = vpack.c.b16 %v118, %v117
  %vm123 = vcmask 261120
  %v125 = vsel %vm123, %v110, 0
  %127 = vmatpush.bf16.msra.mxu0 0
  %128 = vmatpush.bf16.msra.mxu0 0
  %129 = vmatpush.bf16.msra.mxu0 0
  %130 = vmatpush.bf16.msra.mxu0 0
  %131 = vmatpush.bf16.msra.mxu0 0
  %132 = vmatpush.bf16.msra.mxu0 0
  %133 = vmatpush.bf16.msra.mxu0 %v120
  %134 = vmatpush.bf16.msra.mxu0 %v119
  %135 = vmatmul.bf16.gmra.mxu0 %v125
  %v136 = vpop.f32.mrf.mxu0
  %v137 = vadd.f32 %v104, %v136
  %v138 = vpop.f32.mrf.mxu0
  %v139 = vadd.f32 %v104, %v138
  %140 = vdwg.mxu0
  %141 = vst [vmem:[%s5] sm:$0xff] %v137
  %142 = vst [vmem:[%s5 + $0x8] sm:$0xff] %v139
  // Predicated region
  $region26: #{whisper_forward.45} parent=0 // pred_check
    _
  $region27: #{whisper_forward.45} parent=0 // pred_check_branch
    %144 = sbr.rel (0) target = $region29
  $region28: #{whisper_forward.45} parent=0 // pred_region
    _
  $region29: #{whisper_forward.45} parent=0 // pred_fallthru
    _
  // Predicated region
  $region30: #{whisper_forward.45} parent=0 // pred_check
    _
  $region31: #{whisper_forward.45} parent=0 // pred_check_branch
    %146 = sbr.rel (0) target = $region33
  $region32: #{whisper_forward.45} parent=0 // pred_region
    _
  $region33: #{whisper_forward.45} parent=0 // pred_fallthru
    _

// kernel: whisper_forward.32
$region0: #{whisper_forward.32}
  #allocation0 [shape = 'u32[]', space=smem, size = 0x4, offset = 0x4, fixed_abs, tag = 'smem constant byte address 0x4 - core index']
  #allocation1 [shape = 'u32[72,128]{1,0:T(1,128)}', space=vmem, size = 0x9000, scoped, tag = 'internal scratch']
  %s0 = inlined_call_operand.vmem [shape: f32[32,128], index: 0, kind: input, shape index: {}]
  %s1 = inlined_call_operand.vmem [shape: bf16[128,128], index: 1, kind: input, shape index: {}]
  %s2 = inlined_call_operand.vmem [shape: f32[1,128], index: 2, kind: input, shape index: {}]
  %s3 = inlined_call_operand.vmem [shape: f32[32,128], index: 3, kind: output, shape index: {}]
  %s4 = sld [smem:[#allocation0]]
  $region30: #{whisper_forward.32} parent=0
    _
  %s6 = ssub.s32 1, %s4
  %s7 = scalar_select 0, %s6, %s4
  // Predicated region
  $region2: #{whisper_forward.32} parent=0 // pred_check
    _
  $region3: #{whisper_forward.32} parent=0 // pred_check_branch
    %9 = sbr.rel (0) target = $region5
  $region4: #{whisper_forward.32} parent=0 // pred_region
    _
  $region5: #{whisper_forward.32} parent=0 // pred_fallthru
    _
  // Predicated region
  $region6: #{whisper_forward.32} parent=0 // pred_check
    _
  $region7: #{whisper_forward.32} parent=0 // pred_check_branch
    %11 = sbr.rel (0) target = $region9
  $region8: #{whisper_forward.32} parent=0 // pred_region
    _
  $region9: #{whisper_forward.32} parent=0 // pred_fallthru
    _
  // Predicated region
  $region10: #{whisper_forward.32} parent=0 // pred_check
    _
  $region11: #{whisper_forward.32} parent=0 // pred_check_branch
    %13 = sbr.rel (0) target = $region13
  $region12: #{whisper_forward.32} parent=0 // pred_region
    _
  $region13: #{whisper_forward.32} parent=0 // pred_fallthru
    _
  %p14 = scmp.eq.s32.totalorder 0, 0
  // Predicated region
  $region14: #{whisper_forward.32} parent=0 // pred_check
    %p15 = pneg %p14
  $region15: #{whisper_forward.32} parent=0 // pred_check_branch
    %17 = sbr.rel (%p15) target = $region17
  $region16: #{whisper_forward.32} parent=0 // pred_region
    %18 = vst [vmem:[%s3] sm:$0xff] 0.0
    %19 = vst [vmem:[%s3 + $0x8] sm:$0xff] 0.0
    %20 = vst [vmem:[%s3 + $0x10] sm:$0xff] 0.0
    %21 = vst [vmem:[%s3 + $0x18] sm:$0xff] 0.0
  $region17: #{whisper_forward.32} parent=0 // pred_fallthru
    _
  %v22 = vld [vmem:[%s3] sm:$0xff]
  %v23 = vld [vmem:[%s3 + $0x8] sm:$0xff]
  %v24 = vld [vmem:[%s3 + $0x10] sm:$0xff]
  %v25 = vld [vmem:[%s3 + $0x18] sm:$0xff]
  %v26 = vld [vmem:[%s0] sm:$0xff]
  %v27 = vld [vmem:[%s0 + $0x8] sm:$0xff]
  %v28 = vld [vmem:[%s0 + $0x10] sm:$0xff]
  %v29 = vld [vmem:[%s0 + $0x18] sm:$0xff]
  %v30 = vpack.c.bf16 %v27, %v26
  %v31 = vpack.c.bf16 %v29, %v28
  %v32 = vld [vmem:[%s1] sm:$0xf]
  %v33 = vld [vmem:[%s1 + $0x4] sm:$0xf]
  %v34 = vld [vmem:[%s1 + $0x8] sm:$0xf]
  %v35 = vld [vmem:[%s1 + $0xc] sm:$0xf]
  %v36 = vld [vmem:[%s1 + $0x10] sm:$0xf]
  %v37 = vld [vmem:[%s1 + $0x14] sm:$0xf]
  %v38 = vld [vmem:[%s1 + $0x18] sm:$0xf]
  %v39 = vld [vmem:[%s1 + $0x1c] sm:$0xf]
  %v40 = vld [vmem:[%s1 + $0x20] sm:$0xf]
  %v41 = vld [vmem:[%s1 + $0x24] sm:$0xf]
  %v42 = vld [vmem:[%s1 + $0x28] sm:$0xf]
  %v43 = vld [vmem:[%s1 + $0x2c] sm:$0xf]
  %v44 = vld [vmem:[%s1 + $0x30] sm:$0xf]
  %v45 = vld [vmem:[%s1 + $0x34] sm:$0xf]
  %v46 = vld [vmem:[%s1 + $0x38] sm:$0xf]
  %v47 = vld [vmem:[%s1 + $0x3c] sm:$0xf]
  %v64 = vunpack.c.l.b16 %v32
  %v65 = vunpack.c.l.b16 %v33
  %v66 = vunpack.c.l.b16 %v34
  %v67 = vunpack.c.l.b16 %v35
  %v68 = vunpack.c.l.b16 %v36
  %v69 = vunpack.c.l.b16 %v37
  %v70 = vunpack.c.l.b16 %v38
  %v71 = vunpack.c.l.b16 %v39
  %v72 = vunpack.c.l.b16 %v40
  %v73 = vunpack.c.l.b16 %v41
  %v74 = vunpack.c.l.b16 %v42
  %v75 = vunpack.c.l.b16 %v43
  %v76 = vunpack.c.l.b16 %v44
  %v77 = vunpack.c.l.b16 %v45
  %v78 = vunpack.c.l.b16 %v46
  %v79 = vunpack.c.l.b16 %v47
  %v80 = vpack.c.b16 %v65, %v64
  %v81 = vpack.c.b16 %v67, %v66
  %v82 = vpack.c.b16 %v69, %v68
  %v83 = vpack.c.b16 %v71, %v70
  %v84 = vpack.c.b16 %v73, %v72
  %v85 = vpack.c.b16 %v75, %v74
  %v86 = vpack.c.b16 %v77, %v76
  %v87 = vpack.c.b16 %v79, %v78
  %96 = vmatpush.bf16.msra.mxu0 %v87
  %97 = vmatpush.bf16.msra.mxu0 %v86
  %98 = vmatpush.bf16.msra.mxu0 %v85
  %99 = vmatpush.bf16.msra.mxu0 %v84
  %100 = vmatpush.bf16.msra.mxu0 %v83
  %101 = vmatpush.bf16.msra.mxu0 %v82
  %102 = vmatpush.bf16.msra.mxu0 %v81
  %103 = vmatpush.bf16.msra.mxu0 %v80
  %104 = vmatmul.bf16.gmra.mxu0 %v30
  %v105 = vpop.f32.mrf.mxu0
  %v106 = vadd.f32 0.0, %v105
  %v107 = vpop.f32.mrf.mxu0
  %v108 = vadd.f32 0.0, %v107
  %109 = vmatmul.bf16.gmra.mxu0 %v31
  %v110 = vpop.f32.mrf.mxu0
  %v111 = vadd.f32 0.0, %v110
  %v112 = vpop.f32.mrf.mxu0
  %v113 = vadd.f32 0.0, %v112
  %114 = vdwg.mxu0
  %v115 = vadd.f32 %v22, %v106
  %v116 = vadd.f32 %v23, %v108
  %v117 = vadd.f32 %v24, %v111
  %v118 = vadd.f32 %v25, %v113
  %119 = vst [vmem:[%s3] sm:$0xff] %v115
  %120 = vst [vmem:[%s3 + $0x8] sm:$0xff] %v116
  %121 = vst [vmem:[%s3 + $0x10] sm:$0xff] %v117
  %122 = vst [vmem:[%s3 + $0x18] sm:$0xff] %v118
  // Predicated region
  $region18: #{whisper_forward.32} parent=0 // pred_check
    %p123 = pneg %p14
  $region19: #{whisper_forward.32} parent=0 // pred_check_branch
    %125 = sbr.rel (%p123) target = $region21
  $region20: #{whisper_forward.32} parent=0 // pred_region
    %v126 = vld [vmem:[%s3] sm:$0xff]
    %v127 = vld [vmem:[%s3 + $0x8] sm:$0xff]
    %v128 = vld [vmem:[%s3 + $0x10] sm:$0xff]
    %v129 = vld [vmem:[%s3 + $0x18] sm:$0xff]
    %v130 = vld [vmem:[%s2] sm:$0x1]
    %v132 = vperm.slane %v130, 0
    %v134 = vadd.f32 %v126, %v132
    %v135 = vadd.f32 %v127, %v132
    %v136 = vadd.f32 %v128, %v132
    %v137 = vadd.f32 %v129, %v132
    %138 = vst [vmem:[%s3] sm:$0xff] %v134
    %139 = vst [vmem:[%s3 + $0x8] sm:$0xff] %v135
    %140 = vst [vmem:[%s3 + $0x10] sm:$0xff] %v136
    %141 = vst [vmem:[%s3 + $0x18] sm:$0xff] %v137
  $region21: #{whisper_forward.32} parent=0 // pred_fallthru
    _
  // Predicated region
  $region22: #{whisper_forward.32} parent=0 // pred_check
    _
  $region23: #{whisper_forward.32} parent=0 // pred_check_branch
    %143 = sbr.rel (0) target = $region25
  $region24: #{whisper_forward.32} parent=0 // pred_region
    _
  $region25: #{whisper_forward.32} parent=0 // pred_fallthru
    _
  // Predicated region
  $region26: #{whisper_forward.32} parent=0 // pred_check
    _
  $region27: #{whisper_forward.32} parent=0 // pred_check_branch
    %145 = sbr.rel (0) target = $region29
  $region28: #{whisper_forward.32} parent=0 // pred_region
    _
  $region29: #{whisper_forward.32} parent=0 // pred_fallthru
    _

// kernel: whisper_forward.35
$region0: #{whisper_forward.35}
  #allocation0 [shape = 'u32[]', space=smem, size = 0x4, offset = 0x4, fixed_abs, tag = 'smem constant byte address 0x4 - core index']
  #allocation1 [shape = 'u32[72,128]{1,0:T(1,128)}', space=vmem, size = 0x9000, scoped, tag = 'internal scratch']
  %s0 = inlined_call_operand.vmem [shape: bf16[8,8,8], index: 0, kind: input, shape index: {}]
  %s1 = inlined_call_operand.vmem [shape: bf16[8,128,8], index: 1, kind: input, shape index: {}]
  %s2 = inlined_call_operand.vmem [shape: bf16[8,128,8], index: 2, kind: input, shape index: {}]
  %s3 = inlined_call_operand.vmem [shape: f32[8,8,8], index: 3, kind: output, shape index: {}]
  %s4 = sld [smem:[#allocation0]]
  $region45: #{whisper_forward.35} parent=0
    _
  %s6 = ssub.s32 1, %s4
  %s7 = scalar_select 0, %s6, %s4
  loop: start=0, step=1, limit=10
  $region2: #{whisper_forward.35} parent=0 // loop_pre_header
    _
  $region3: #{whisper_forward.35} parent=0 // loop_header
    %s9 = sphi 0, %s13
    %p10 = scmp.ge.s32.totalorder %s9, 10
    %s16 = sphi 0, %s28
    %s17 = sphi 0, %s24
    %s18 = sphi 0, %s16
    %s19 = sphi 0, %s17
    %s20 = sphi 0, %s18
    %s21 = sphi 0, %s19
    %s33 = sphi 0, %s35
    %s36 = sphi 0, %s33
    %s37 = sphi 0, %s36
    %s53 = sphi 0, %s37
    %s59 = sphi 0, %s61
    %s62 = sphi 0, %s59
    %s63 = sphi 0, %s62
    %s79 = sphi 0, %s63
    %s85 = sphi 0, %s87
    %s88 = sphi 0, %s85
    %s89 = sphi 0, %s88
    %s105 = sphi 0, %s89
    %s113 = sphi 0, %s115
    %s116 = sphi 0, %s113
    %s117 = sphi 0, %s116
    %s133 = sphi 0, %s117
  $region4: #{whisper_forward.35} parent=0 // loop_header_branch
    %12 = sbr.rel (%p10) target = $region8
  $region5: #{whisper_forward.35} parent=0 // loop_body
    %s14 = ssub.s32 %s9, 1
    %s15 = ssub.s32 %s9, 2
    %s22 = sadd.s32 1, %s17
    %p23 = scmp.ge.s32.totalorder %s22, 1
    %s24 = scalar_select %p23, 0, %s22
    %s25 = sadd.s32 1, %s16
    %s26 = scalar_select %p23, %s25, %s16
    %p27 = scmp.ge.s32.totalorder %s26, 8
    %s28 = scalar_select %p27, 0, %s26
    %s29 = ssub.s32 %s16, %s28
    %s30 = ssub.s32 %s17, %s24
    %s31 = sor.u32 %s29, %s30
    %p32 = scmp.eq.s32.totalorder %s31, 0
    %s34 = sadd.s32 %s33, 1
    %s35 = scalar_select %p32, %s33, %s34
    %p38 = pneg %p32
    %p39 = scmp.eq.s32.totalorder %s9, 7
    %p40 = por %p38, %p39
    %p41 = scmp.ne.s32.totalorder %s33, %s36
    %p42 = scmp.eq.s32.totalorder %s9, 0
    %p43 = por %p41, %p42
    %p44 = scmp.ne.s32.totalorder %s33, %s36
    %p45 = scmp.eq.s32.totalorder %s14, 7
    %p46 = por %p44, %p45
    %p47 = scmp.ne.s32.totalorder %s36, %s37
    %p48 = scmp.eq.s32.totalorder %s14, 0
    %p49 = por %p47, %p48
    %p50 = scmp.ne.s32.totalorder %s36, %s37
    %p51 = scmp.eq.s32.totalorder %s15, 7
    %p52 = por %p50, %p51
    %p54 = scmp.ne.s32.totalorder %s37, %s53
    %p55 = scmp.eq.s32.totalorder %s15, 0
    %p56 = por %p54, %p55
    %s57 = ssub.s32 %s16, %s28
    %p58 = scmp.eq.s32.totalorder %s57, 0
    %s60 = sadd.s32 %s59, 1
    %s61 = scalar_select %p58, %s59, %s60
    %p64 = pneg %p58
    %p65 = scmp.eq.s32.totalorder %s9, 7
    %p66 = por %p64, %p65
    %p67 = scmp.ne.s32.totalorder %s59, %s62
    %p68 = scmp.eq.s32.totalorder %s9, 0
    %p69 = por %p67, %p68
    %p70 = scmp.ne.s32.totalorder %s59, %s62
    %p71 = scmp.eq.s32.totalorder %s14, 7
    %p72 = por %p70, %p71
    %p73 = scmp.ne.s32.totalorder %s62, %s63
    %p74 = scmp.eq.s32.totalorder %s14, 0
    %p75 = por %p73, %p74
    %p76 = scmp.ne.s32.totalorder %s62, %s63
    %p77 = scmp.eq.s32.totalorder %s15, 7
    %p78 = por %p76, %p77
    %p80 = scmp.ne.s32.totalorder %s63, %s79
    %p81 = scmp.eq.s32.totalorder %s15, 0
    %p82 = por %p80, %p81
    %s83 = ssub.s32 %s16, %s28
    %p84 = scmp.eq.s32.totalorder %s83, 0
    %s86 = sadd.s32 %s85, 1
    %s87 = scalar_select %p84, %s85, %s86
    %p90 = pneg %p84
    %p91 = scmp.eq.s32.totalorder %s9, 7
    %p92 = por %p90, %p91
    %p93 = scmp.ne.s32.totalorder %s85, %s88
    %p94 = scmp.eq.s32.totalorder %s9, 0
    %p95 = por %p93, %p94
    %p96 = scmp.ne.s32.totalorder %s85, %s88
    %p97 = scmp.eq.s32.totalorder %s14, 7
    %p98 = por %p96, %p97
    %p99 = scmp.ne.s32.totalorder %s88, %s89
    %p100 = scmp.eq.s32.totalorder %s14, 0
    %p101 = por %p99, %p100
    %p102 = scmp.ne.s32.totalorder %s88, %s89
    %p103 = scmp.eq.s32.totalorder %s15, 7
    %p104 = por %p102, %p103
    %p106 = scmp.ne.s32.totalorder %s89, %s105
    %p107 = scmp.eq.s32.totalorder %s15, 0
    %p108 = por %p106, %p107
    %s109 = ssub.s32 %s16, %s28
    %s110 = ssub.s32 %s17, %s24
    %s111 = sor.u32 %s109, %s110
    %p112 = scmp.eq.s32.totalorder %s111, 0
    %s114 = sadd.s32 %s113, 1
    %s115 = scalar_select %p112, %s113, %s114
    %p118 = pneg %p112
    %p119 = scmp.eq.s32.totalorder %s9, 7
    %p120 = por %p118, %p119
    %p121 = scmp.ne.s32.totalorder %s113, %s116
    %p122 = scmp.eq.s32.totalorder %s9, 0
    %p123 = por %p121, %p122
    %p124 = scmp.ne.s32.totalorder %s113, %s116
    %p125 = scmp.eq.s32.totalorder %s14, 7
    %p126 = por %p124, %p125
    %p127 = scmp.ne.s32.totalorder %s116, %s117
    %p128 = scmp.eq.s32.totalorder %s14, 0
    %p129 = por %p127, %p128
    %p130 = scmp.ne.s32.totalorder %s116, %s117
    %p131 = scmp.eq.s32.totalorder %s15, 7
    %p132 = por %p130, %p131
    %p134 = scmp.ne.s32.totalorder %s117, %s133
    %p135 = scmp.eq.s32.totalorder %s15, 0
    %p136 = por %p134, %p135
    %p137 = scmp.le.s32.totalorder 1, %s9
    %p138 = scmp.lt.s32.totalorder %s9, 9
    %p139 = pnand %p137, %p138
    %p140 = pneg %p139
    // Predicated region
    $region9: #{whisper_forward.35} parent=5 // pred_check
      _
    $region10: #{whisper_forward.35} parent=5 // pred_check_branch
      %142 = sbr.rel (%p139) target = $region12
    $region11: #{whisper_forward.35} parent=5 // pred_region
      %s143 = ssub.s32 %s9, 1
    $region12: #{whisper_forward.35} parent=5 // pred_fallthru
      _
    %p144 = scmp.lt.s32.totalorder %s9, 8
    // Predicated region
    $region13: #{whisper_forward.35} parent=5 // pred_check
      %p145 = pneg %p144
    $region14: #{whisper_forward.35} parent=5 // pred_check_branch
      %147 = sbr.rel (%p145) target = $region16
    $region15: #{whisper_forward.35} parent=5 // pred_region
      // Predicated region
      $region17: #{whisper_forward.35} parent=15 // pred_check
        %p148 = pneg %p43
      $region18: #{whisper_forward.35} parent=15 // pred_check_branch
        %150 = sbr.rel (%p148) target = $region20
      $region19: #{whisper_forward.35} parent=15 // pred_region
        %p151 = scmp.lt.s32.totalorder %s16, 7
        %s152 = scalar_select %p151, %s16, 7
        %p153 = scmp.lt.s32.totalorder %s17, 0
        %s154 = scalar_select %p153, %s17, 0
        %s155 = sadd.s32 %s154, %s152
        %s156 = smul.addr %s155, 4
        %s157 = scalar_lea.vmem %s0, %s156
      $region20: #{whisper_forward.35} parent=15 // pred_fallthru
        _
      // Predicated region
      $region21: #{whisper_forward.35} parent=15 // pred_check
        %p158 = pneg %p69
      $region22: #{whisper_forward.35} parent=15 // pred_check_branch
        %160 = sbr.rel (%p158) target = $region24
      $region23: #{whisper_forward.35} parent=15 // pred_region
        %p161 = scmp.lt.s32.totalorder %s16, 7
        %s162 = scalar_select %p161, %s16, 7
        %s163 = smul.addr %s162, 16
        %s164 = smul.addr %s163, 4
        %s165 = scalar_lea.vmem %s1, %s164
      $region24: #{whisper_forward.35} parent=15 // pred_fallthru
        _
      // Predicated region
      $region25: #{whisper_forward.35} parent=15 // pred_check
        %p166 = pneg %p95
      $region26: #{whisper_forward.35} parent=15 // pred_check_branch
        %168 = sbr.rel (%p166) target = $region28
      $region27: #{whisper_forward.35} parent=15 // pred_region
        %p169 = scmp.lt.s32.totalorder %s16, 7
        %s170 = scalar_select %p169, %s16, 7
        %s171 = smul.addr %s170, 16
        %s172 = smul.addr %s171, 4
        %s173 = scalar_lea.vmem %s2, %s172
      $region28: #{whisper_forward.35} parent=15 // pred_fallthru
        _
    $region16: #{whisper_forward.35} parent=5 // pred_fallthru
      _
    %p174 = scmp.le.s32.totalorder 1, %s9
    %p175 = scmp.lt.s32.totalorder %s9, 9
    %p176 = pnand %p174, %p175
    %p177 = pneg %p176
    // Predicated region
    $region29: #{whisper_forward.35} parent=5 // pred_check
      _
    $region30: #{whisper_forward.35} parent=5 // pred_check_branch
      %179 = sbr.rel (%p176) target = $region32
    $region31: #{whisper_forward.35} parent=5 // pred_region
      %s180 = ssub.s32 %s9, 1
      %p181 = scmp.lt.s32.totalorder %s18, 7
      %s182 = scalar_select %p181, %s18, 7
      %p183 = scmp.lt.s32.totalorder %s19, 0
      %s184 = scalar_select %p183, %s19, 0
      %s185 = sadd.s32 %s184, %s182
      %s186 = smul.addr %s185, 4
      %s187 = scalar_lea.vmem %s0, %s186
      %p188 = pneg %p49
      %p189 = pneg %p46
      %p190 = scmp.lt.s32.totalorder %s18, 7
      %s191 = scalar_select %p190, %s18, 7
      %s192 = smul.addr %s191, 16
      %s193 = smul.addr %s192, 4
      %s194 = scalar_lea.vmem %s1, %s193
      %p195 = pneg %p75
      %p196 = pneg %p72
      %p197 = scmp.lt.s32.totalorder %s18, 7
      %s198 = scalar_select %p197, %s18, 7
      %s199 = smul.addr %s198, 16
      %s200 = smul.addr %s199, 4
      %s201 = scalar_lea.vmem %s2, %s200
      %p202 = pneg %p101
      %p203 = pneg %p98
      %p204 = pneg %p129
      %p205 = pneg %p126
      %p206 = scmp.lt.s32.totalorder %s18, 7
      %s207 = scalar_select %p206, %s18, 7
      %p208 = scmp.lt.s32.totalorder %s19, 0
      %s209 = scalar_select %p208, %s19, 0
      %s210 = sadd.s32 %s209, %s207
      %s211 = smul.addr %s210, 8
      %s212 = scalar_lea.vmem %s3, %s211
      %p213 = scmp.lt.s32.totalorder %s18, 7
      %s214 = scalar_select %p213, %s18, 7
      %p215 = scmp.lt.s32.totalorder %s19, 0
      %s216 = scalar_select %p215, %s19, 0
      %s217 = sadd.s32 %s216, %s214
      %s218 = smul.addr %s217, 4
      %s219 = scalar_lea.vmem %s0, %s218
      %p220 = scmp.lt.s32.totalorder %s18, 7
      %s221 = scalar_select %p220, %s18, 7
      %s222 = smul.addr %s221, 16
      %s223 = smul.addr %s222, 4
      %s224 = scalar_lea.vmem %s1, %s223
      %p225 = scmp.lt.s32.totalorder %s18, 7
      %s226 = scalar_select %p225, %s18, 7
      %s227 = smul.addr %s226, 16
      %s228 = smul.addr %s227, 4
      %s229 = scalar_lea.vmem %s2, %s228
      %p230 = scmp.lt.s32.totalorder %s18, 7
      %s231 = scalar_select %p230, %s18, 7
      %p232 = scmp.lt.s32.totalorder %s19, 0
      %s233 = scalar_select %p232, %s19, 0
      %s234 = sadd.s32 %s233, %s231
      %s235 = smul.addr %s234, 8
      %s236 = scalar_lea.vmem %s3, %s235
      %v237 = vld [vmem:[%s219] sm:$0xf]
      %v238 = vld [vmem:[%s224] sm:$0xf]
      %v239 = vld [vmem:[%s224 + $0x4] sm:$0xf]
      %v240 = vld [vmem:[%s224 + $0x8] sm:$0xf]
      %v241 = vld [vmem:[%s224 + $0xc] sm:$0xf]
      %v242 = vld [vmem:[%s224 + $0x10] sm:$0xf]
      %v243 = vld [vmem:[%s224 + $0x14] sm:$0xf]
      %v244 = vld [vmem:[%s224 + $0x18] sm:$0xf]
      %v245 = vld [vmem:[%s224 + $0x1c] sm:$0xf]
      %v246 = vld [vmem:[%s224 + $0x20] sm:$0xf]
      %v247 = vld [vmem:[%s224 + $0x24] sm:$0xf]
      %v248 = vld [vmem:[%s224 + $0x28] sm:$0xf]
      %v249 = vld [vmem:[%s224 + $0x2c] sm:$0xf]
      %v250 = vld [vmem:[%s224 + $0x30] sm:$0xf]
      %v251 = vld [vmem:[%s224 + $0x34] sm:$0xf]
      %v252 = vld [vmem:[%s224 + $0x38] sm:$0xf]
      %v253 = vld [vmem:[%s224 + $0x3c] sm:$0xf]
      %v270 = vunpack.c.l.b16 %v238
      %v271 = vunpack.c.l.b16 %v239
      %v272 = vunpack.c.l.b16 %v240
      %v273 = vunpack.c.l.b16 %v241
      %v274 = vunpack.c.l.b16 %v242
      %v275 = vunpack.c.l.b16 %v243
      %v276 = vunpack.c.l.b16 %v244
      %v277 = vunpack.c.l.b16 %v245
      %v278 = vunpack.c.l.b16 %v246
      %v279 = vunpack.c.l.b16 %v247
      %v280 = vunpack.c.l.b16 %v248
      %v281 = vunpack.c.l.b16 %v249
      %v282 = vunpack.c.l.b16 %v250
      %v283 = vunpack.c.l.b16 %v251
      %v284 = vunpack.c.l.b16 %v252
      %v285 = vunpack.c.l.b16 %v253
      %v286 = vpack.c.b16 %v271, %v270
      %v287 = vpack.c.b16 %v273, %v272
      %v288 = vpack.c.b16 %v275, %v274
      %v289 = vpack.c.b16 %v277, %v276
      %v290 = vpack.c.b16 %v279, %v278
      %v291 = vpack.c.b16 %v281, %v280
      %v292 = vpack.c.b16 %v283, %v282
      %v293 = vpack.c.b16 %v285, %v284
      %vm294 = vcmask 64512
      %v296 = vsel %vm294, %v237, 0
      %v299 = vsel %vm294, %v286, 0
      %v302 = vsel %vm294, %v287, 0
      %v305 = vsel %vm294, %v288, 0
      %v308 = vsel %vm294, %v289, 0
      %v311 = vsel %vm294, %v290, 0
      %v314 = vsel %vm294, %v291, 0
      %v317 = vsel %vm294, %v292, 0
      %v320 = vsel %vm294, %v293, 0
      %322 = vmatpush.bf16.xpose.msra.mxu0 %v320
      %323 = vmatpush.bf16.xpose.msra.mxu0 %v317
      %324 = vmatpush.bf16.xpose.msra.mxu0 %v314
      %325 = vmatpush.bf16.xpose.msra.mxu0 %v311
      %326 = vmatpush.bf16.xpose.msra.mxu0 %v308
      %327 = vmatpush.bf16.xpose.msra.mxu0 %v305
      %328 = vmatpush.bf16.xpose.msra.mxu0 %v302
      %329 = vmatpush.bf16.xpose.msra.mxu0 %v299
      %330 = vmatmul.bf16.gmra.mxu0 %v296
      %v331 = vpop.f32.mrf.mxu0
      %v332 = vadd.f32 0.0, %v331
      %v333 = vpop.f32.mrf.mxu0
      %334 = vdwg.mxu0
      %v335 = vlaneseq
      %v336 = vand.u32 %v335, 127
      %vm337 = vcmp.lt.s32.totalorder %v336, 8
      %v338 = vsel %vm337, %v332, -1e+30
      %339 = vmax.xlane.f32.xlu0 %v338
      %v340 = vpop.xlane.xlu0 %339
      %v341 = vsub.f32 %v338, %v340
      %v342 = vmul.f32 %v341, 1.442695
      %v343 = vpow.pop %v342
      %344 = vadd.xlane.f32.xlu0 %v343
      %v345 = vpop.xlane.xlu0 %344
      %v346 = vpack.c.bf16 %v343, %v343
      %v347 = vld [vmem:[%s229] sm:$0xf]
      %v348 = vld [vmem:[%s229 + $0x4] sm:$0xf]
      %v349 = vld [vmem:[%s229 + $0x8] sm:$0xf]
      %v350 = vld [vmem:[%s229 + $0xc] sm:$0xf]
      %v351 = vld [vmem:[%s229 + $0x10] sm:$0xf]
      %v352 = vld [vmem:[%s229 + $0x14] sm:$0xf]
      %v353 = vld [vmem:[%s229 + $0x18] sm:$0xf]
      %v354 = vld [vmem:[%s229 + $0x1c] sm:$0xf]
      %v355 = vld [vmem:[%s229 + $0x20] sm:$0xf]
      %v356 = vld [vmem:[%s229 + $0x24] sm:$0xf]
      %v357 = vld [vmem:[%s229 + $0x28] sm:$0xf]
      %v358 = vld [vmem:[%s229 + $0x2c] sm:$0xf]
      %v359 = vld [vmem:[%s229 + $0x30] sm:$0xf]
      %v360 = vld [vmem:[%s229 + $0x34] sm:$0xf]
      %v361 = vld [vmem:[%s229 + $0x38] sm:$0xf]
      %v362 = vld [vmem:[%s229 + $0x3c] sm:$0xf]
      %v379 = vunpack.c.l.b16 %v347
      %v380 = vunpack.c.l.b16 %v348
      %v381 = vunpack.c.l.b16 %v349
      %v382 = vunpack.c.l.b16 %v350
      %v383 = vunpack.c.l.b16 %v351
      %v384 = vunpack.c.l.b16 %v352
      %v385 = vunpack.c.l.b16 %v353
      %v386 = vunpack.c.l.b16 %v354
      %v387 = vunpack.c.l.b16 %v355
      %v388 = vunpack.c.l.b16 %v356
      %v389 = vunpack.c.l.b16 %v357
      %v390 = vunpack.c.l.b16 %v358
      %v391 = vunpack.c.l.b16 %v359
      %v392 = vunpack.c.l.b16 %v360
      %v393 = vunpack.c.l.b16 %v361
      %v394 = vunpack.c.l.b16 %v362
      %v395 = vpack.c.b16 %v380, %v379
      %v396 = vpack.c.b16 %v382, %v381
      %v397 = vpack.c.b16 %v384, %v383
      %v398 = vpack.c.b16 %v386, %v385
      %v399 = vpack.c.b16 %v388, %v387
      %v400 = vpack.c.b16 %v390, %v389
      %v401 = vpack.c.b16 %v392, %v391
      %v402 = vpack.c.b16 %v394, %v393
      %411 = vmatpush.bf16.msra.mxu0 %v402
      %412 = vmatpush.bf16.msra.mxu0 %v401
      %413 = vmatpush.bf16.msra.mxu0 %v400
      %414 = vmatpush.bf16.msra.mxu0 %v399
      %415 = vmatpush.bf16.msra.mxu0 %v398
      %416 = vmatpush.bf16.msra.mxu0 %v397
      %417 = vmatpush.bf16.msra.mxu0 %v396
      %418 = vmatpush.bf16.msra.mxu0 %v395
      %419 = vmatmul.bf16.gmra.mxu0 %v346
      %v420 = vpop.f32.mrf.mxu0
      %v421 = vadd.f32 0.0, %v420
      %v422 = vpop.f32.mrf.mxu0
      %423 = vdwg.mxu0
      %v424 = vrcp.pop %v345
      %v425 = vmul.f32 %v421, %v424
      %426 = vst.msk [vmem:[%s236] sm:$0xff] %vm294, %v425
      %p427 = scmp.lt.s32.totalorder %s18, 7
      %s428 = scalar_select %p427, %s18, 7
      %p429 = scmp.lt.s32.totalorder %s19, 0
      %s430 = scalar_select %p429, %s19, 0
      %s431 = sadd.s32 %s430, %s428
      %s432 = smul.addr %s431, 8
      %s433 = scalar_lea.vmem %s3, %s432
      // Predicated region
      $region33: #{whisper_forward.35} parent=31 // pred_check
        %p434 = pneg %p126
      $region34: #{whisper_forward.35} parent=31 // pred_check_branch
        %436 = sbr.rel (%p434) target = $region36
      $region35: #{whisper_forward.35} parent=31 // pred_region
        _
      $region36: #{whisper_forward.35} parent=31 // pred_fallthru
        _
    $region32: #{whisper_forward.35} parent=5 // pred_fallthru
      _
    %p437 = scmp.le.s32.totalorder 2, %s9
    // Predicated region
    $region37: #{whisper_forward.35} parent=5 // pred_check
      %p438 = pneg %p437
    $region38: #{whisper_forward.35} parent=5 // pred_check_branch
      %440 = sbr.rel (%p438) target = $region40
    $region39: #{whisper_forward.35} parent=5 // pred_region
      %s441 = ssub.s32 %s9, 2
      // Predicated region
      $region41: #{whisper_forward.35} parent=39 // pred_check
        %p442 = pneg %p132
      $region42: #{whisper_forward.35} parent=39 // pred_check_branch
        %444 = sbr.rel (%p442) target = $region44
      $region43: #{whisper_forward.35} parent=39 // pred_region
        %p445 = scmp.lt.s32.totalorder %s20, 7
        %s446 = scalar_select %p445, %s20, 7
        %p447 = scmp.lt.s32.totalorder %s21, 0
        %s448 = scalar_select %p447, %s21, 0
        %s449 = sadd.s32 %s448, %s446
        %s450 = smul.addr %s449, 8
        %s451 = scalar_lea.vmem %s3, %s450
      $region44: #{whisper_forward.35} parent=39 // pred_fallthru
        _
    $region40: #{whisper_forward.35} parent=5 // pred_fallthru
      _
  $region6: #{whisper_forward.35} parent=0 // loop_footer
    %s13 = sadd.s32 1, %s9
  $region7: #{whisper_forward.35} parent=0 // loop_footer_branch
    %8 = sbr.rel target = $region3
  $region8: #{whisper_forward.35} parent=0 // loop_exit
    _

// kernel: whisper_forward.44
$region0: #{whisper_forward.44}
  #allocation0 [shape = 'u32[]', space=smem, size = 0x4, offset = 0x4, fixed_abs, tag = 'smem constant byte address 0x4 - core index']
  #allocation1 [shape = 'u32[72,128]{1,0:T(1,128)}', space=vmem, size = 0x9000, scoped, tag = 'internal scratch']
  %s0 = inlined_call_operand.vmem [shape: f32[16,32], index: 0, kind: input, shape index: {}]
  %s1 = inlined_call_operand.vmem [shape: f32[1,32], index: 1, kind: input, shape index: {}]
  %s2 = inlined_call_operand.vmem [shape: f32[1,32], index: 2, kind: input, shape index: {}]
  %s3 = inlined_call_operand.vmem [shape: f32[16,32], index: 3, kind: output, shape index: {}]
  %s4 = sld [smem:[#allocation0]]
  $region22: #{whisper_forward.44} parent=0
    _
  %s6 = ssub.s32 1, %s4
  %s7 = scalar_select 0, %s6, %s4
  // Predicated region
  $region2: #{whisper_forward.44} parent=0 // pred_check
    _
  $region3: #{whisper_forward.44} parent=0 // pred_check_branch
    %9 = sbr.rel (0) target = $region5
  $region4: #{whisper_forward.44} parent=0 // pred_region
    _
  $region5: #{whisper_forward.44} parent=0 // pred_fallthru
    _
  // Predicated region
  $region6: #{whisper_forward.44} parent=0 // pred_check
    _
  $region7: #{whisper_forward.44} parent=0 // pred_check_branch
    %11 = sbr.rel (0) target = $region9
  $region8: #{whisper_forward.44} parent=0 // pred_region
    _
  $region9: #{whisper_forward.44} parent=0 // pred_fallthru
    _
  // Predicated region
  $region10: #{whisper_forward.44} parent=0 // pred_check
    _
  $region11: #{whisper_forward.44} parent=0 // pred_check_branch
    %13 = sbr.rel (0) target = $region13
  $region12: #{whisper_forward.44} parent=0 // pred_region
    _
  $region13: #{whisper_forward.44} parent=0 // pred_fallthru
    _
  %v14 = vld [vmem:[%s0] sm:$0xff]
  %v15 = vld [vmem:[%s0 + $0x8] sm:$0xff]
  %vm16 = vcmask 261120
  %v17 = vsel %vm16, %v14, 0.0
  %18 = vadd.xlane.f32.xlu0 %v17
  %v19 = vpop.xlane.xlu0 %18
  %v20 = vsel %vm16, %v15, 0.0
  %21 = vadd.xlane.f32.xlu0 %v20
  %v22 = vpop.xlane.xlu0 %21
  %v23 = vrcp.pop 32.0
  %v24 = vmul.f32 32.0, %v23
  %v25 = vsub.f32 1.0, %v24
  %v26 = vmul.f32 %v23, %v25
  %v27 = vadd.f32 %v23, %v26
  %vm28 = vweird.f32 %v23
  %v29 = vsel %vm28, %v23, %v27
  %v30 = vmul.f32 %v19, %v29
  %v31 = vmul.f32 %v22, %v29
  %v32 = vsub.f32 %v14, %v30
  %v33 = vsub.f32 %v15, %v31
  %v34 = vmul.f32 %v32, %v32
  %v35 = vmul.f32 %v33, %v33
  %v36 = vsel %vm16, %v34, 0.0
  %37 = vadd.xlane.f32.xlu0 %v36
  %v38 = vpop.xlane.xlu0 %37
  %v39 = vsel %vm16, %v35, 0.0
  %40 = vadd.xlane.f32.xlu0 %v39
  %v41 = vpop.xlane.xlu0 %40
  %v42 = vmul.f32 %v38, %v29
  %v43 = vmul.f32 %v41, %v29
  %v44 = vadd.f32 %v42, 1e-05
  %v45 = vadd.f32 %v43, 1e-05
  %v46 = vrsqrt.pop %v44
  %v47 = vmul.f32 %v46, %v44
  %v48 = vmul.f32 %v47, %v46
  %v49 = vmul.f32 0.5, %v48
  %v50 = vsub.f32 1.5, %v49
  %v51 = vmul.f32 %v46, %v50
  %vm52 = vweird.f32 %v44
  %vm53 = vweird.f32 %v46
  %vm54 = vmor %vm52, %vm53
  %v55 = vsel %vm54, %v46, %v51
  %v56 = vrsqrt.pop %v45
  %v57 = vmul.f32 %v56, %v45
  %v58 = vmul.f32 %v57, %v56
  %v59 = vmul.f32 0.5, %v58
  %v60 = vsub.f32 1.5, %v59
  %v61 = vmul.f32 %v56, %v60
  %vm62 = vweird.f32 %v45
  %vm63 = vweird.f32 %v56
  %vm64 = vmor %vm62, %vm63
  %v65 = vsel %vm64, %v56, %v61
  %v66 = vmul.f32 %v32, %v55
  %v67 = vmul.f32 %v33, %v65
  %v68 = vld [vmem:[%s1] sm:$0x1]
  %v70 = vperm.slane %v68, 0
  %v72 = vmul.f32 %v66, %v70
  %v73 = vmul.f32 %v67, %v70
  %v74 = vld [vmem:[%s2] sm:$0x1]
  %v76 = vperm.slane %v74, 0
  %v78 = vadd.f32 %v72, %v76
  %v79 = vadd.f32 %v73, %v76
  %80 = vst.msk [vmem:[%s3] sm:$0xff] %vm16, %v78
  %81 = vst.msk [vmem:[%s3 + $0x8] sm:$0xff] %vm16, %v79
  // Predicated region
  $region14: #{whisper_forward.44} parent=0 // pred_check
    _
  $region15: #{whisper_forward.44} parent=0 // pred_check_branch
    %83 = sbr.rel (0) target = $region17
  $region16: #{whisper_forward.44} parent=0 // pred_region
    _
  $region17: #{whisper_forward.44} parent=0 // pred_fallthru
    _
  // Predicated region
  $region18: #{whisper_forward.44} parent=0 // pred_check
    _
  $region19: #{whisper_forward.44} parent=0 // pred_check_branch
    %85 = sbr.rel (0) target = $region21
  $region20: #{whisper_forward.44} parent=0 // pred_region
    _
  $region21: #{whisper_forward.44} parent=0 // pred_fallthru
    _

// kernel: whisper_forward.63
$region0: #{whisper_forward.63}
  #allocation0 [shape = 'u32[]', space=smem, size = 0x4, offset = 0x4, fixed_abs, tag = 'smem constant byte address 0x4 - core index']
  #allocation1 [shape = 'u32[72,128]{1,0:T(1,128)}', space=vmem, size = 0x9000, scoped, tag = 'internal scratch']
  #allocation2 [shape = 'bf16[16,32]{1,0:T(8,128)(2,1)}', space=vmem, size = 0x1000, scoped, tag = 'scratch operand']
  %s0 = inlined_call_operand.vmem [shape: f32[16,32], index: 0, kind: input, shape index: {}]
  %s1 = inlined_call_operand.vmem [shape: f32[1,32], index: 1, kind: input, shape index: {}]
  %s2 = inlined_call_operand.vmem [shape: f32[1,32], index: 2, kind: input, shape index: {}]
  %s3 = inlined_call_operand.vmem [shape: bf16[512,32], index: 3, kind: input, shape index: {}]
  %s4 = inlined_call_operand.vmem [shape: f32[1,512], index: 4, kind: input, shape index: {}]
  %s5 = inlined_call_operand.vmem [shape: f32[16,512], index: 5, kind: output, shape index: {}]
  %s6 = sld [smem:[#allocation0]]
  $region34: #{whisper_forward.63} parent=0
    _
  %s8 = ssub.s32 1, %s6
  %s9 = scalar_select 0, %s8, %s6
  // Predicated region
  $region2: #{whisper_forward.63} parent=0 // pred_check
    _
  $region3: #{whisper_forward.63} parent=0 // pred_check_branch
    %11 = sbr.rel (0) target = $region5
  $region4: #{whisper_forward.63} parent=0 // pred_region
    _
  $region5: #{whisper_forward.63} parent=0 // pred_fallthru
    _
  // Predicated region
  $region6: #{whisper_forward.63} parent=0 // pred_check
    _
  $region7: #{whisper_forward.63} parent=0 // pred_check_branch
    %13 = sbr.rel (0) target = $region9
  $region8: #{whisper_forward.63} parent=0 // pred_region
    _
  $region9: #{whisper_forward.63} parent=0 // pred_fallthru
    _
  // Predicated region
  $region10: #{whisper_forward.63} parent=0 // pred_check
    _
  $region11: #{whisper_forward.63} parent=0 // pred_check_branch
    %15 = sbr.rel (0) target = $region13
  $region12: #{whisper_forward.63} parent=0 // pred_region
    _
  $region13: #{whisper_forward.63} parent=0 // pred_fallthru
    _
  // Predicated region
  $region14: #{whisper_forward.63} parent=0 // pred_check
    _
  $region15: #{whisper_forward.63} parent=0 // pred_check_branch
    %17 = sbr.rel (0) target = $region17
  $region16: #{whisper_forward.63} parent=0 // pred_region
    _
  $region17: #{whisper_forward.63} parent=0 // pred_fallthru
    _
  // Predicated region
  $region18: #{whisper_forward.63} parent=0 // pred_check
    _
  $region19: #{whisper_forward.63} parent=0 // pred_check_branch
    %19 = sbr.rel (0) target = $region21
  $region20: #{whisper_forward.63} parent=0 // pred_region
    _
  $region21: #{whisper_forward.63} parent=0 // pred_fallthru
    _
  %p20 = scmp.eq.s32.totalorder 0, 0
  // Predicated region
  $region22: #{whisper_forward.63} parent=0 // pred_check
    %p21 = pneg %p20
  $region23: #{whisper_forward.63} parent=0 // pred_check_branch
    %23 = sbr.rel (%p21) target = $region25
  $region24: #{whisper_forward.63} parent=0 // pred_region
    %v24 = vld [vmem:[%s0] sm:$0xff]
    %v25 = vld [vmem:[%s0 + $0x8] sm:$0xff]
    %vm26 = vcmask 261120
    %v27 = vsel %vm26, %v24, 0.0
    %28 = vadd.xlane.f32.xlu0 %v27
    %v29 = vpop.xlane.xlu0 %28
    %v30 = vsel %vm26, %v25, 0.0
    %31 = vadd.xlane.f32.xlu0 %v30
    %v32 = vpop.xlane.xlu0 %31
    %v33 = vrcp.pop 32.0
    %v34 = vmul.f32 32.0, %v33
    %v35 = vsub.f32 1.0, %v34
    %v36 = vmul.f32 %v33, %v35
    %v37 = vadd.f32 %v33, %v36
    %vm38 = vweird.f32 %v33
    %v39 = vsel %vm38, %v33, %v37
    %v40 = vmul.f32 %v29, %v39
    %v41 = vmul.f32 %v32, %v39
    %v42 = vsub.f32 %v24, %v40
    %v43 = vsub.f32 %v25, %v41
    %v44 = vmul.f32 %v42, %v42
    %v45 = vmul.f32 %v43, %v43
    %v46 = vsel %vm26, %v44, 0.0
    %47 = vadd.xlane.f32.xlu0 %v46
    %v48 = vpop.xlane.xlu0 %47
    %v49 = vsel %vm26, %v45, 0.0
    %50 = vadd.xlane.f32.xlu0 %v49
    %v51 = vpop.xlane.xlu0 %50
    %v52 = vmul.f32 %v48, %v39
    %v53 = vmul.f32 %v51, %v39
    %v54 = vadd.f32 %v52, 1e-05
    %v55 = vadd.f32 %v53, 1e-05
    %v56 = vrsqrt.pop %v54
    %v57 = vmul.f32 %v56, %v54
    %v58 = vmul.f32 %v57, %v56
    %v59 = vmul.f32 0.5, %v58
    %v60 = vsub.f32 1.5, %v59
    %v61 = vmul.f32 %v56, %v60
    %vm62 = vweird.f32 %v54
    %vm63 = vweird.f32 %v56
    %vm64 = vmor %vm62, %vm63
    %v65 = vsel %vm64, %v56, %v61
    %v66 = vrsqrt.pop %v55
    %v67 = vmul.f32 %v66, %v55
    %v68 = vmul.f32 %v67, %v66
    %v69 = vmul.f32 0.5, %v68
    %v70 = vsub.f32 1.5, %v69
    %v71 = vmul.f32 %v66, %v70
    %vm72 = vweird.f32 %v55
    %vm73 = vweird.f32 %v66
    %vm74 = vmor %vm72, %vm73
    %v75 = vsel %vm74, %v66, %v71
    %v76 = vmul.f32 %v42, %v65
    %v77 = vmul.f32 %v43, %v75
    %v78 = vld [vmem:[%s1] sm:$0x1]
    %v80 = vperm.slane %v78, 0
    %v82 = vmul.f32 %v76, %v80
    %v83 = vmul.f32 %v77, %v80
    %v84 = vld [vmem:[%s2] sm:$0x1]
    %v86 = vperm.slane %v84, 0
    %v88 = vadd.f32 %v82, %v86
    %v89 = vadd.f32 %v83, %v86
    %v90 = vpack.c.bf16 %v88, %v88
    %v91 = vpack.c.bf16 %v89, %v89
    %vm92 = vcmask 257024
    %93 = vst.msk [vmem:[#allocation2] sm:$0xf] %vm92, %v90
    %94 = vst.msk [vmem:[#allocation2 + $0x4] sm:$0xf] %vm92, %v91
  $region25: #{whisper_forward.63} parent=0 // pred_fallthru
    _
  %v95 = vld [vmem:[#allocation2] sm:$0xf]
  %v96 = vld [vmem:[#allocation2 + $0x4] sm:$0xf]
  %v97 = vld [vmem:[%s3] sm:$0xf]
  %v98 = vld [vmem:[%s3 + $0x4] sm:$0xf]
  %v99 = vld [vmem:[%s3 + $0x8] sm:$0xf]
  %v100 = vld [vmem:[%s3 + $0xc] sm:$0xf]
  %v101 = vld [vmem:[%s3 + $0x10] sm:$0xf]
  %v102 = vld [vmem:[%s3 + $0x14] sm:$0xf]
  %v103 = vld [vmem:[%s3 + $0x18] sm:$0xf]
  %v104 = vld [vmem:[%s3 + $0x1c] sm:$0xf]
  %v105 = vld [vmem:[%s3 + $0x20] sm:$0xf]
  %v106 = vld [vmem:[%s3 + $0x24] sm:$0xf]
  %v107 = vld [vmem:[%s3 + $0x28] sm:$0xf]
  %v108 = vld [vmem:[%s3 + $0x2c] sm:$0xf]
  %v109 = vld [vmem:[%s3 + $0x30] sm:$0xf]
  %v110 = vld [vmem:[%s3 + $0x34] sm:$0xf]
  %v111 = vld [vmem:[%s3 + $0x38] sm:$0xf]
  %v112 = vld [vmem:[%s3 + $0x3c] sm:$0xf]
  %v113 = vld [vmem:[%s3 + $0x40] sm:$0xf]
  %v114 = vld [vmem:[%s3 + $0x44] sm:$0xf]
  %v115 = vld [vmem:[%s3 + $0x48] sm:$0xf]
  %v116 = vld [vmem:[%s3 + $0x4c] sm:$0xf]
  %v117 = vld [vmem:[%s3 + $0x50] sm:$0xf]
  %v118 = vld [vmem:[%s3 + $0x54] sm:$0xf]
  %v119 = vld [vmem:[%s3 + $0x58] sm:$0xf]
  %v120 = vld [vmem:[%s3 + $0x5c] sm:$0xf]
  %v121 = vld [vmem:[%s3 + $0x60] sm:$0xf]
  %v122 = vld [vmem:[%s3 + $0x64] sm:$0xf]
  %v123 = vld [vmem:[%s3 + $0x68] sm:$0xf]
  %v124 = vld [vmem:[%s3 + $0x6c] sm:$0xf]
  %v125 = vld [vmem:[%s3 + $0x70] sm:$0xf]
  %v126 = vld [vmem:[%s3 + $0x74] sm:$0xf]
  %v127 = vld [vmem:[%s3 + $0x78] sm:$0xf]
  %v128 = vld [vmem:[%s3 + $0x7c] sm:$0xf]
  %v129 = vld [vmem:[%s3 + $0x80] sm:$0xf]
  %v130 = vld [vmem:[%s3 + $0x84] sm:$0xf]
  %v131 = vld [vmem:[%s3 + $0x88] sm:$0xf]
  %v132 = vld [vmem:[%s3 + $0x8c] sm:$0xf]
  %v133 = vld [vmem:[%s3 + $0x90] sm:$0xf]
  %v134 = vld [vmem:[%s3 + $0x94] sm:$0xf]
  %v135 = vld [vmem:[%s3 + $0x98] sm:$0xf]
  %v136 = vld [vmem:[%s3 + $0x9c] sm:$0xf]
  %v137 = vld [vmem:[%s3 + $0xa0] sm:$0xf]
  %v138 = vld [vmem:[%s3 + $0xa4] sm:$0xf]
  %v139 = vld [vmem:[%s3 + $0xa8] sm:$0xf]
  %v140 = vld [vmem:[%s3 + $0xac] sm:$0xf]
  %v141 = vld [vmem:[%s3 + $0xb0] sm:$0xf]
  %v142 = vld [vmem:[%s3 + $0xb4] sm:$0xf]
  %v143 = vld [vmem:[%s3 + $0xb8] sm:$0xf]
  %v144 = vld [vmem:[%s3 + $0xbc] sm:$0xf]
  %v145 = vld [vmem:[%s3 + $0xc0] sm:$0xf]
  %v146 = vld [vmem:[%s3 + $0xc4] sm:$0xf]
  %v147 = vld [vmem:[%s3 + $0xc8] sm:$0xf]
  %v148 = vld [vmem:[%s3 + $0xcc] sm:$0xf]
  %v149 = vld [vmem:[%s3 + $0xd0] sm:$0xf]
  %v150 = vld [vmem:[%s3 + $0xd4] sm:$0xf]
  %v151 = vld [vmem:[%s3 + $0xd8] sm:$0xf]
  %v152 = vld [vmem:[%s3 + $0xdc] sm:$0xf]
  %v153 = vld [vmem:[%s3 + $0xe0] sm:$0xf]
  %v154 = vld [vmem:[%s3 + $0xe4] sm:$0xf]
  %v155 = vld [vmem:[%s3 + $0xe8] sm:$0xf]
  %v156 = vld [vmem:[%s3 + $0xec] sm:$0xf]
  %v157 = vld [vmem:[%s3 + $0xf0] sm:$0xf]
  %v158 = vld [vmem:[%s3 + $0xf4] sm:$0xf]
  %v159 = vld [vmem:[%s3 + $0xf8] sm:$0xf]
  %v160 = vld [vmem:[%s3 + $0xfc] sm:$0xf]
  %v161 = vld [vmem:[%s4] sm:$0xf]
  %v163 = vperm.slane %v161, 0
  %v164 = vperm.slane %v161, 1
  %v165 = vperm.slane %v161, 2
  %v166 = vperm.slane %v161, 3
  %v173 = vunpack.c.l.b16 %v95
  %v174 = vunpack.c.l.b16 %v96
  %v175 = vpack.c.b16 %v174, %v173
  %v240 = vunpack.c.l.b16 %v97
  %v241 = vunpack.c.l.b16 %v98
  %v242 = vunpack.c.l.b16 %v99
  %v243 = vunpack.c.l.b16 %v100
  %v244 = vunpack.c.l.b16 %v101
  %v245 = vunpack.c.l.b16 %v102
  %v246 = vunpack.c.l.b16 %v103
  %v247 = vunpack.c.l.b16 %v104
  %v248 = vunpack.c.l.b16 %v105
  %v249 = vunpack.c.l.b16 %v106
  %v250 = vunpack.c.l.b16 %v107
  %v251 = vunpack.c.l.b16 %v108
  %v252 = vunpack.c.l.b16 %v109
  %v253 = vunpack.c.l.b16 %v110
  %v254 = vunpack.c.l.b16 %v111
  %v255 = vunpack.c.l.b16 %v112
  %v256 = vunpack.c.l.b16 %v113
  %v257 = vunpack.c.l.b16 %v114
  %v258 = vunpack.c.l.b16 %v115
  %v259 = vunpack.c.l.b16 %v116
  %v260 = vunpack.c.l.b16 %v117
  %v261 = vunpack.c.l.b16 %v118
  %v262 = vunpack.c.l.b16 %v119
  %v263 = vunpack.c.l.b16 %v120
  %v264 = vunpack.c.l.b16 %v121
  %v265 = vunpack.c.l.b16 %v122
  %v266 = vunpack.c.l.b16 %v123
  %v267 = vunpack.c.l.b16 %v124
  %v268 = vunpack.c.l.b16 %v125
  %v269 = vunpack.c.l.b16 %v126
  %v270 = vunpack.c.l.b16 %v127
  %v271 = vunpack.c.l.b16 %v128
  %v272 = vunpack.c.l.b16 %v129
  %v273 = vunpack.c.l.b16 %v130
  %v274 = vunpack.c.l.b16 %v131
  %v275 = vunpack.c.l.b16 %v132
  %v276 = vunpack.c.l.b16 %v133
  %v277 = vunpack.c.l.b16 %v134
  %v278 = vunpack.c.l.b16 %v135
  %v279 = vunpack.c.l.b16 %v136
  %v280 = vunpack.c.l.b16 %v137
  %v281 = vunpack.c.l.b16 %v138
  %v282 = vunpack.c.l.b16 %v139
  %v283 = vunpack.c.l.b16 %v140
  %v284 = vunpack.c.l.b16 %v141
  %v285 = vunpack.c.l.b16 %v142
  %v286 = vunpack.c.l.b16 %v143
  %v287 = vunpack.c.l.b16 %v144
  %v288 = vunpack.c.l.b16 %v145
  %v289 = vunpack.c.l.b16 %v146
  %v290 = vunpack.c.l.b16 %v147
  %v291 = vunpack.c.l.b16 %v148
  %v292 = vunpack.c.l.b16 %v149
  %v293 = vunpack.c.l.b16 %v150
  %v294 = vunpack.c.l.b16 %v151
  %v295 = vunpack.c.l.b16 %v152
  %v296 = vunpack.c.l.b16 %v153
  %v297 = vunpack.c.l.b16 %v154
  %v298 = vunpack.c.l.b16 %v155
  %v299 = vunpack.c.l.b16 %v156
  %v300 = vunpack.c.l.b16 %v157
  %v301 = vunpack.c.l.b16 %v158
  %v302 = vunpack.c.l.b16 %v159
  %v303 = vunpack.c.l.b16 %v160
  %v304 = vpack.c.b16 %v241, %v240
  %v305 = vpack.c.b16 %v243, %v242
  %v306 = vpack.c.b16 %v245, %v244
  %v307 = vpack.c.b16 %v247, %v246
  %v308 = vpack.c.b16 %v249, %v248
  %v309 = vpack.c.b16 %v251, %v250
  %v310 = vpack.c.b16 %v253, %v252
  %v311 = vpack.c.b16 %v255, %v254
  %v312 = vpack.c.b16 %v257, %v256
  %v313 = vpack.c.b16 %v259, %v258
  %v314 = vpack.c.b16 %v261, %v260
  %v315 = vpack.c.b16 %v263, %v262
  %v316 = vpack.c.b16 %v265, %v264
  %v317 = vpack.c.b16 %v267, %v266
  %v318 = vpack.c.b16 %v269, %v268
  %v319 = vpack.c.b16 %v271, %v270
  %v320 = vpack.c.b16 %v273, %v272
  %v321 = vpack.c.b16 %v275, %v274
  %v322 = vpack.c.b16 %v277, %v276
  %v323 = vpack.c.b16 %v279, %v278
  %v324 = vpack.c.b16 %v281, %v280
  %v325 = vpack.c.b16 %v283, %v282
  %v326 = vpack.c.b16 %v285, %v284
  %v327 = vpack.c.b16 %v287, %v286
  %v328 = vpack.c.b16 %v289, %v288
  %v329 = vpack.c.b16 %v291, %v290
  %v330 = vpack.c.b16 %v293, %v292
  %v331 = vpack.c.b16 %v295, %v294
  %v332 = vpack.c.b16 %v297, %v296
  %v333 = vpack.c.b16 %v299, %v298
  %v334 = vpack.c.b16 %v301, %v300
  %v335 = vpack.c.b16 %v303, %v302
  %vm336 = vcmask 261120
  %v338 = vsel %vm336, %v175, 0
  %v341 = vsel %vm336, %v304, 0
  %v344 = vsel %vm336, %v305, 0
  %v347 = vsel %vm336, %v306, 0
  %v350 = vsel %vm336, %v307, 0
  %v353 = vsel %vm336, %v308, 0
  %v356 = vsel %vm336, %v309, 0
  %v359 = vsel %vm336, %v310, 0
  %v362 = vsel %vm336, %v311, 0
  %v365 = vsel %vm336, %v312, 0
  %v368 = vsel %vm336, %v313, 0
  %v371 = vsel %vm336, %v314, 0
  %v374 = vsel %vm336, %v315, 0
  %v377 = vsel %vm336, %v316, 0
  %v380 = vsel %vm336, %v317, 0
  %v383 = vsel %vm336, %v318, 0
  %v386 = vsel %vm336, %v319, 0
  %v389 = vsel %vm336, %v320, 0
  %v392 = vsel %vm336, %v321, 0
  %v395 = vsel %vm336, %v322, 0
  %v398 = vsel %vm336, %v323, 0
  %v401 = vsel %vm336, %v324, 0
  %v404 = vsel %vm336, %v325, 0
  %v407 = vsel %vm336, %v326, 0
  %v410 = vsel %vm336, %v327, 0
  %v413 = vsel %vm336, %v328, 0
  %v416 = vsel %vm336, %v329, 0
  %v419 = vsel %vm336, %v330, 0
  %v422 = vsel %vm336, %v331, 0
  %v425 = vsel %vm336, %v332, 0
  %v428 = vsel %vm336, %v333, 0
  %v431 = vsel %vm336, %v334, 0
  %v434 = vsel %vm336, %v335, 0
  %436 = vmatpush.bf16.xpose.msra.mxu0 %v362
  %437 = vmatpush.bf16.xpose.msra.mxu0 %v359
  %438 = vmatpush.bf16.xpose.msra.mxu0 %v356
  %439 = vmatpush.bf16.xpose.msra.mxu0 %v353
  %440 = vmatpush.bf16.xpose.msra.mxu0 %v350
  %441 = vmatpush.bf16.xpose.msra.mxu0 %v347
  %442 = vmatpush.bf16.xpose.msra.mxu0 %v344
  %443 = vmatpush.bf16.xpose.msra.mxu0 %v341
  %444 = vmatmul.bf16.gmra.mxu0 %v338
  %v445 = vpop.f32.mrf.mxu0
  %v446 = vadd.f32 %v163, %v445
  %v447 = vpop.f32.mrf.mxu0
  %v448 = vadd.f32 %v163, %v447
  %449 = vdwg.mxu0
  %450 = vmatpush.bf16.xpose.msra.mxu0 %v386
  %451 = vmatpush.bf16.xpose.msra.mxu0 %v383
  %452 = vmatpush.bf16.xpose.msra.mxu0 %v380
  %453 = vmatpush.bf16.xpose.msra.mxu0 %v377
  %454 = vmatpush.bf16.xpose.msra.mxu0 %v374
  %455 = vmatpush.bf16.xpose.msra.mxu0 %v371
  %456 = vmatpush.bf16.xpose.msra.mxu0 %v368
  %457 = vmatpush.bf16.xpose.msra.mxu0 %v365
  %458 = vmatmul.bf16.gmra.mxu0 %v338
  %v459 = vpop.f32.mrf.mxu0
  %v460 = vadd.f32 %v164, %v459
  %v461 = vpop.f32.mrf.mxu0
  %v462 = vadd.f32 %v164, %v461
  %463 = vdwg.mxu0
  %464 = vmatpush.bf16.xpose.msra.mxu0 %v410
  %465 = vmatpush.bf16.xpose.msra.mxu0 %v407
  %466 = vmatpush.bf16.xpose.msra.mxu0 %v404
  %467 = vmatpush.bf16.xpose.msra.mxu0 %v401
  %468 = vmatpush.bf16.xpose.msra.mxu0 %v398
  %469 = vmatpush.bf16.xpose.msra.mxu0 %v395
  %470 = vmatpush.bf16.xpose.msra.mxu0 %v392
  %471 = vmatpush.bf16.xpose.msra.mxu0 %v389
  %472 = vmatmul.bf16.gmra.mxu0 %v338
  %v473 = vpop.f32.mrf.mxu0
  %v474 = vadd.f32 %v165, %v473
  %v475 = vpop.f32.mrf.mxu0
  %v476 = vadd.f32 %v165, %v475
  %477 = vdwg.mxu0
  %478 = vmatpush.bf16.xpose.msra.mxu0 %v434
  %479 = vmatpush.bf16.xpose.msra.mxu0 %v431
  %480 = vmatpush.bf16.xpose.msra.mxu0 %v428
  %481 = vmatpush.bf16.xpose.msra.mxu0 %v425
  %482 = vmatpush.bf16.xpose.msra.mxu0 %v422
  %483 = vmatpush.bf16.xpose.msra.mxu0 %v419
  %484 = vmatpush.bf16.xpose.msra.mxu0 %v416
  %485 = vmatpush.bf16.xpose.msra.mxu0 %v413
  %486 = vmatmul.bf16.gmra.mxu0 %v338
  %v487 = vpop.f32.mrf.mxu0
  %v488 = vadd.f32 %v166, %v487
  %v489 = vpop.f32.mrf.mxu0
  %v490 = vadd.f32 %v166, %v489
  %491 = vdwg.mxu0
  %492 = vst [vmem:[%s5] sm:$0xff] %v446
  %493 = vst [vmem:[%s5 + $0x8] sm:$0xff] %v460
  %494 = vst [vmem:[%s5 + $0x10] sm:$0xff] %v474
  %495 = vst [vmem:[%s5 + $0x18] sm:$0xff] %v488
  %496 = vst [vmem:[%s5 + $0x20] sm:$0xff] %v448
  %497 = vst [vmem:[%s5 + $0x28] sm:$0xff] %v462
  %498 = vst [vmem:[%s5 + $0x30] sm:$0xff] %v476
  %499 = vst [vmem:[%s5 + $0x38] sm:$0xff] %v490
  // Predicated region
  $region26: #{whisper_forward.63} parent=0 // pred_check
    _
  $region27: #{whisper_forward.63} parent=0 // pred_check_branch
    %501 = sbr.rel (0) target = $region29
  $region28: #{whisper_forward.63} parent=0 // pred_region
    _
  $region29: #{whisper_forward.63} parent=0 // pred_fallthru
    _
  // Predicated region
  $region30: #{whisper_forward.63} parent=0 // pred_check
    _
  $region31: #{whisper_forward.63} parent=0 // pred_check_branch
    %503 = sbr.rel (0) target = $region33
  $region32: #{whisper_forward.63} parent=0 // pred_region
    _
  $region33: #{whisper_forward.63} parent=0 // pred_fallthru
    _

</llo_original>
